<compile_context>
chip_gen: v5e
topology: v5e:2x2
jax: 0.10.0
libtpu: 0.0.40
codegen_flags: <defaults>
</compile_context>

<pallas_src>
import functools

import jax
import jax.numpy as jnp
from jax.experimental import pallas as pl
from jax.experimental.pallas import tpu as pltpu


def _elu(v):
    # torch.nn.ELU(alpha=1.0); clamp the untaken branch so exp cannot overflow.
    return jnp.where(v > 0, v, jnp.exp(jnp.minimum(v, 0.0)) - 1.0)


def _softplus(v):
    # torch.nn.Softplus(beta=1, threshold=20); clamp keeps exp finite.
    return jnp.where(v > 20.0, v, jnp.log(1.0 + jnp.exp(jnp.minimum(v, 20.0))))


def _per_cluster_head_kernel(
    x_ref,                              # (1, C_in, Bt*L) f32   lane-dense batch block
    w1_ref, b1_ref,                     # (F, C_in) bf16, (F, 1) f32
    w2_ref, b2_ref,                     # (F, F)    bf16, (F, 1) f32
    w3_ref, b3_ref,                     # (F, F)    bf16, (F, 1) f32
    wf_ref, bf_ref,                     # (K*T, F)  bf16, (T, 1) f32   stacked final conv
    wc1_ref, wc2_ref, wc3_ref,          # (F, C_in), (F, F), (F, F) bf16  counts MLP (no bias)
    wc4_ref, bc4_ref,                   # (T, F) bf16, (T, 1) f32
    profile_ref,                        # (1, Bt*T, Lout) f32  output
    counts_ref,                         # (1, T, Bt) f32       output
    gap_ref,                            # (C_in, Bt) f32       VMEM scratch
    *, Bt, L, K, T,
):
    bf16 = jnp.bfloat16
    f32 = jnp.float32
    N = Bt * L
    Lout = L - K + 1
    W = N - K + 1                        # width of the shift-accumulated conv result

    x = x_ref[0]                         # (C_in, N) f32

    # ---- shape head: three 1x1 convs, ONE matmul per layer over the whole block ----
    h = _elu(jnp.dot(w1_ref[...], x.astype(bf16), preferred_element_type=f32) + b1_ref[...])
    h = _elu(jnp.dot(w2_ref[...], h.astype(bf16), preferred_element_type=f32) + b2_ref[...])
    h = _elu(jnp.dot(w3_ref[...], h.astype(bf16), preferred_element_type=f32) + b3_ref[...])

    # ---- final conv (kernel_size=K, padding='valid'): ONE stacked matmul ----
    # y[k*T + t, p] = sum_f wf[k, t, f] * h[f, p];  logits[t, p] = sum_k y[k*T+t, p+k].
    y = jnp.dot(wf_ref[...], h.astype(bf16), preferred_element_type=f32)   # (K*T, N)
    acc = y[0:T, 0:W] + bf_ref[...]      # fold the conv bias into the accumulator init
    for k in range(1, K):
        acc = acc + y[k * T:(k + 1) * T, k:k + W]
    # NOTE: for large K this shift-add chain can move to the (otherwise idle) XLU
    # via a strided pltpu.roll + sublane reduce once the roll direction is pinned.

    # ---- per-batch logits stacked on sublanes -> ONE batched softmax ----
    # Windows never cross a batch boundary because j + k <= L - 1 within a segment.
    for b in range(Bt):
        profile_ref[0, b * T:(b + 1) * T, :] = acc[:, b * L:b * L + Lout]
    logits = profile_ref[0]                                            # (Bt*T, Lout)
    m = jnp.max(logits, axis=-1, keepdims=True)
    e = jnp.exp(logits - m)
    denom = jnp.sum(e, axis=-1, keepdims=True)
    profile_ref[0] = e * pl.reciprocal(denom, approx=True)

    # ---- counts head: global average pool + MLP batched over the block ----
    for b in range(Bt):
        gap_ref[:, b:b + 1] = jnp.mean(x[:, b * L:(b + 1) * L], axis=-1, keepdims=True)
    gap = gap_ref[...]                                                 # (C_in, Bt)
    g = _elu(jnp.dot(wc1_ref[...], gap.astype(bf16), preferred_element_type=f32))
    g = _elu(jnp.dot(wc2_ref[...], g.astype(bf16), preferred_element_type=f32))
    g = _elu(jnp.dot(wc3_ref[...], g.astype(bf16), preferred_element_type=f32))
    c = jnp.dot(wc4_ref[...], g.astype(bf16), preferred_element_type=f32) + bc4_ref[...]
    counts_ref[0] = _softplus(c)                                       # (T, Bt) lane-dense store


def _pick_block_batch(B, L, C_in, F, KT, cap=8):
    """Largest divisor of B (<= cap) whose block footprint fits comfortably in
    scoped VMEM; prefer a choice leaving grid >= 2 so both v7x TensorCores work."""
    def fits(bt):
        # f32 footprint of the big per-block tensors (input, h, stacked conv out),
        # x2 for double buffering / temporaries; stay well under 32 MiB scoped VMEM.
        return 8 * bt * L * (C_in + 2 * F + KT) <= 24 * (1 << 20)
    divs = [d for d in range(min(B, cap), 0, -1) if B % d == 0 and fits(d)]
    if not divs:
        return 1
    for d in divs:
        if B // d >= 2:
            return d
    return divs[0]


def per_cluster_head(seq, atac, params, profile_kernel_size):
    """seq: (B, C1, L), atac: (B, C2, L) -> (profile (B, T, Lout), counts (B, T))."""
    B, C1, L = seq.shape
    C2 = atac.shape[1]
    C_in = C1 + C2
    K = profile_kernel_size
    F = params["w1t"].shape[0]
    T = params["bf"].shape[0]
    Lout = L - K + 1

    Bt = _pick_block_batch(B, L, C_in, F, K * T)
    G = B // Bt
    N = Bt * L
    # NOTE: for very large F*Bt*L (beyond VMEM) the block should additionally be
    # tiled over L (overlapping by K-1) — not needed at these module sizes.

    # Lane-dense activations: one (C_in, Bt*L) slab per grid step.
    x_in = jnp.concatenate([seq, atac], axis=1).astype(jnp.float32)        # (B, C_in, L)
    x3d = jnp.transpose(x_in.reshape(G, Bt, C_in, L), (0, 2, 1, 3)).reshape(G, C_in, N)

    bf16 = jnp.bfloat16
    w1 = params["w1t"].astype(bf16)
    w2 = params["w2t"].astype(bf16)
    w3 = params["w3t"].astype(bf16)
    wf = params["wf"].reshape(K * T, F).astype(bf16)     # row k*T + t  <->  tap k, task t
    wc1 = params["wc1t"].astype(bf16)
    wc2 = params["wc2t"].astype(bf16)
    wc3 = params["wc3t"].astype(bf16)
    wc4 = params["wc4t"].astype(bf16)

    full = lambda shape: pl.BlockSpec(shape, lambda i: (0, 0))
    in_specs = [
        pl.BlockSpec((1, C_in, N), lambda i: (i, 0, 0)),
        full((F, C_in)), full((F, 1)),
        full((F, F)), full((F, 1)),
        full((F, F)), full((F, 1)),
        full((K * T, F)), full((T, 1)),
        full((F, C_in)), full((F, F)), full((F, F)),
        full((T, F)), full((T, 1)),
    ]
    out_specs = [
        pl.BlockSpec((1, Bt * T, Lout), lambda i: (i, 0, 0)),
        pl.BlockSpec((1, T, Bt), lambda i: (i, 0, 0)),
    ]
    out_shape = [
        jax.ShapeDtypeStruct((G, Bt * T, Lout), jnp.float32),
        jax.ShapeDtypeStruct((G, T, Bt), jnp.float32),
    ]

    # Rough per-step VMEM need (f32): input block + h + stacked conv result + outputs.
    block_bytes = 4 * (C_in * N + 2 * F * N + K * T * N + Bt * T * Lout)
    vmem_limit = int(min(max(32 * (1 << 20), 3 * block_bytes), 128 * (1 << 20)))

    kernel = functools.partial(_per_cluster_head_kernel, Bt=Bt, L=L, K=K, T=T)
    profile3d, counts3d = pl.pallas_call(
        kernel,
        grid=(G,),
        in_specs=in_specs,
        out_specs=out_specs,
        out_shape=out_shape,
        scratch_shapes=[pltpu.VMEM((C_in, Bt), jnp.float32)],
        compiler_params=pltpu.CompilerParams(
            dimension_semantics=("parallel",),
            vmem_limit_bytes=vmem_limit,
        ),
    )(x3d, w1, params["b1"], w2, params["b2"], w3, params["b3"],
      wf, params["bf"], wc1, wc2, wc3, wc4, params["bc4"])

    profile = profile3d.reshape(G, Bt, T, Lout).reshape(B, T, Lout)
    counts = jnp.transpose(counts3d, (0, 2, 1)).reshape(B, T)
    return profile, counts


def _init_params(key, c_in, shape_filters, profile_kernel_size, num_tasks):
    F, K, T = shape_filters, profile_kernel_size, num_tasks
    ks = jax.random.split(key, 12)
    n = lambda k, s, scale: (scale * jax.random.normal(k, s)).astype(jnp.float32)
    return {
        # shape head 1x1 convs stored as (out, in); biases as columns (out, 1)
        "w1t": n(ks[0], (F, c_in), 0.3), "b1": n(ks[1], (F, 1), 0.1),
        "w2t": n(ks[2], (F, F), 0.1),    "b2": n(ks[3], (F, 1), 0.1),
        "w3t": n(ks[4], (F, F), 0.1),    "b3": n(ks[5], (F, 1), 0.1),
        # final conv weight stored as (K, T, F); bias (T, 1)
        "wf": n(ks[6], (K, T, F), 0.1),  "bf": n(ks[7], (T, 1), 0.1),
        # counts head (bias-free MLP) + final linear with bias, all (out, in)
        "wc1t": n(ks[8], (F, c_in), 0.3),
        "wc2t": n(ks[9], (F, F), 0.1),
        "wc3t": n(ks[10], (F, F), 0.1),
        "wc4t": n(ks[11], (T, F), 0.1),
        "bc4": jnp.full((T, 1), 0.05, jnp.float32),
    }


def _reference(seq, atac, params, K):
    """Pure-JAX (f32) reference reproducing the PyTorch forward."""
    elu = lambda v: jnp.where(v > 0, v, jnp.expm1(v))
    x = jnp.concatenate([seq, atac], axis=1)              # (B, C_in, L)
    h = jnp.transpose(x, (0, 2, 1))                       # (B, L, C_in)
    h = elu(h @ params["w1t"].T + params["b1"][:, 0])
    h = elu(h @ params["w2t"].T + params["b2"][:, 0])
    h = elu(h @ params["w3t"].T + params["b3"][:, 0])
    B, L, _ = h.shape
    T = params["wf"].shape[1]
    Lout = L - K + 1
    acc = jnp.zeros((B, Lout, T), jnp.float32)
    for k in range(K):
        acc = acc + h[:, k:k + Lout, :] @ params["wf"][k].T
    logits = jnp.transpose(acc, (0, 2, 1)) + params["bf"][None, :, :]   # (B, T, Lout)
    profile = jax.nn.softmax(logits, axis=2)
    gap = jnp.concatenate([seq.mean(axis=2), atac.mean(axis=2)], axis=1)  # (B, C_in)
    g = elu(gap @ params["wc1t"].T)
    g = elu(g @ params["wc2t"].T)
    g = elu(g @ params["wc3t"].T)
    counts = jax.nn.softplus(g @ params["wc4t"].T + params["bc4"][:, 0])
    return profile, counts


if __name__ == "__main__":
    # Small, module-consistent shapes (B=4 -> Bt=2 blocks, grid of 2 steps).
    B, C1, C2, L = 4, 4, 4, 32
    shape_filters = 32
    profile_kernel_size = 9       # -> Lout = 24
    num_tasks = 1

    key = jax.random.PRNGKey(0)
    k_seq, k_atac, k_params = jax.random.split(key, 3)
    seq = jax.random.normal(k_seq, (B, C1, L), jnp.float32)
    atac = jax.random.normal(k_atac, (B, C2, L), jnp.float32)
    params = _init_params(k_params, C1 + C2, shape_filters, profile_kernel_size, num_tasks)

    profile, counts = per_cluster_head(seq, atac, params, profile_kernel_size)
    jax.block_until_ready((profile, counts))

    ref_profile, ref_counts = _reference(seq, atac, params, profile_kernel_size)
    assert profile.shape == (B, num_tasks, L - profile_kernel_size + 1)
    assert counts.shape == (B, num_tasks)
    # bf16 matmul operands (f32 accumulation) + approx reciprocal -> loosened tolerances.
    assert jnp.allclose(profile, ref_profile, rtol=5e-2, atol=5e-3), (
        float(jnp.max(jnp.abs(profile - ref_profile))))
    assert jnp.allclose(counts, ref_counts, rtol=5e-2, atol=5e-3), (
        float(jnp.max(jnp.abs(counts - ref_counts))))
    print("KERNEL_OK")
</pallas_src>

<mosaic_0001>
module attributes {stable_mosaic.version = 11 : i64} {
  func.func @_per_cluster_head_kernel(%arg0: i32, %arg1: memref<1x8x64xf32, #tpu.memory_space<vmem>>, %arg2: memref<32x8xbf16, #tpu.memory_space<vmem>>, %arg3: memref<32x1xf32, #tpu.memory_space<vmem>>, %arg4: memref<32x32xbf16, #tpu.memory_space<vmem>>, %arg5: memref<32x1xf32, #tpu.memory_space<vmem>>, %arg6: memref<32x32xbf16, #tpu.memory_space<vmem>>, %arg7: memref<32x1xf32, #tpu.memory_space<vmem>>, %arg8: memref<9x32xbf16, #tpu.memory_space<vmem>>, %arg9: memref<1x1xf32, #tpu.memory_space<vmem>>, %arg10: memref<32x8xbf16, #tpu.memory_space<vmem>>, %arg11: memref<32x32xbf16, #tpu.memory_space<vmem>>, %arg12: memref<32x32xbf16, #tpu.memory_space<vmem>>, %arg13: memref<1x32xbf16, #tpu.memory_space<vmem>>, %arg14: memref<1x1xf32, #tpu.memory_space<vmem>>, %arg15: memref<1x2x24xf32, #tpu.memory_space<vmem>>, %arg16: memref<1x1x2xf32, #tpu.memory_space<vmem>>, %arg17: memref<8x2xf32, #tpu.memory_space<vmem>>) attributes {dimension_semantics = [#tpu.dimension_semantics<parallel>], iteration_bounds = array<i64: 2>, scalar_prefetch = 0 : i64, scratch_operands = 1 : i64, tpu.core_type = #tpu.core_type<tc>, window_params = [{transform_indices = @transform_0, window_bounds = array<i64: 1, 8, 64>}, {pipeline_mode = #tpu.pipeline_mode<synchronous>, transform_indices = @transform_1, window_bounds = array<i64: 32, 8>}, {pipeline_mode = #tpu.pipeline_mode<synchronous>, transform_indices = @transform_2, window_bounds = array<i64: 32, 1>}, {pipeline_mode = #tpu.pipeline_mode<synchronous>, transform_indices = @transform_3, window_bounds = array<i64: 32, 32>}, {pipeline_mode = #tpu.pipeline_mode<synchronous>, transform_indices = @transform_4, window_bounds = array<i64: 32, 1>}, {pipeline_mode = #tpu.pipeline_mode<synchronous>, transform_indices = @transform_5, window_bounds = array<i64: 32, 32>}, {pipeline_mode = #tpu.pipeline_mode<synchronous>, transform_indices = @transform_6, window_bounds = array<i64: 32, 1>}, {pipeline_mode = #tpu.pipeline_mode<synchronous>, transform_indices = @transform_7, window_bounds = array<i64: 9, 32>}, {pipeline_mode = #tpu.pipeline_mode<synchronous>, transform_indices = @transform_8, window_bounds = array<i64: 1, 1>}, {pipeline_mode = #tpu.pipeline_mode<synchronous>, transform_indices = @transform_9, window_bounds = array<i64: 32, 8>}, {pipeline_mode = #tpu.pipeline_mode<synchronous>, transform_indices = @transform_10, window_bounds = array<i64: 32, 32>}, {pipeline_mode = #tpu.pipeline_mode<synchronous>, transform_indices = @transform_11, window_bounds = array<i64: 32, 32>}, {pipeline_mode = #tpu.pipeline_mode<synchronous>, transform_indices = @transform_12, window_bounds = array<i64: 1, 32>}, {pipeline_mode = #tpu.pipeline_mode<synchronous>, transform_indices = @transform_13, window_bounds = array<i64: 1, 1>}, {transform_indices = @transform_14, window_bounds = array<i64: 1, 2, 24>}, {transform_indices = @transform_15, window_bounds = array<i64: 1, 1, 2>}]} {
    %c0 = arith.constant 0 : index
    %c0_0 = arith.constant 0 : index
    %c0_1 = arith.constant 0 : index
    %0 = vector.load %arg1[%c0, %c0_0, %c0_1] : memref<1x8x64xf32, #tpu.memory_space<vmem>>, vector<1x8x64xf32>
    %1 = vector.shape_cast %0 : vector<1x8x64xf32> to vector<8x64xf32>
    %c0_2 = arith.constant 0 : index
    %c0_3 = arith.constant 0 : index
    %2 = vector.load %arg2[%c0_2, %c0_3] : memref<32x8xbf16, #tpu.memory_space<vmem>>, vector<32x8xbf16>
    %3 = arith.truncf %1 : vector<8x64xf32> to vector<8x64xbf16>
    %cst = arith.constant dense<0.000000e+00> : vector<32x64xf32>
    %4 = tpu.matmul %2, %3, %cst {dimension_numbers = #tpu.dot_dimension_numbers<[1], [0], [0], [1], [0, 0, 1, 1], [], []>} : vector<32x8xbf16>, vector<8x64xbf16>, vector<32x64xf32> -> vector<32x64xf32>
    %c0_4 = arith.constant 0 : index
    %c0_5 = arith.constant 0 : index
    %5 = vector.load %arg3[%c0_4, %c0_5] : memref<32x1xf32, #tpu.memory_space<vmem>>, vector<32x1xf32>
    %6 = vector.broadcast %5 : vector<32x1xf32> to vector<32x64xf32>
    %7 = arith.addf %4, %6 : vector<32x64xf32>
    %cst_6 = arith.constant 0.000000e+00 : f32
    %8 = vector.broadcast %cst_6 : f32 to vector<32x64xf32>
    %9 = arith.cmpf ogt, %7, %8 : vector<32x64xf32>
    %cst_7 = arith.constant 0.000000e+00 : f32
    %10 = vector.broadcast %cst_7 : f32 to vector<32x64xf32>
    %11 = arith.minimumf %7, %10 : vector<32x64xf32>
    %12 = math.exp %11 : vector<32x64xf32>
    %cst_8 = arith.constant 1.000000e+00 : f32
    %13 = vector.broadcast %cst_8 : f32 to vector<32x64xf32>
    %14 = arith.subf %12, %13 : vector<32x64xf32>
    %15 = arith.select %9, %7, %14 : vector<32x64xi1>, vector<32x64xf32>
    %c0_9 = arith.constant 0 : index
    %c0_10 = arith.constant 0 : index
    %16 = vector.load %arg4[%c0_9, %c0_10] : memref<32x32xbf16, #tpu.memory_space<vmem>>, vector<32x32xbf16>
    %17 = arith.truncf %15 : vector<32x64xf32> to vector<32x64xbf16>
    %cst_11 = arith.constant dense<0.000000e+00> : vector<32x64xf32>
    %18 = tpu.matmul %16, %17, %cst_11 {dimension_numbers = #tpu.dot_dimension_numbers<[1], [0], [0], [1], [0, 0, 1, 1], [], []>} : vector<32x32xbf16>, vector<32x64xbf16>, vector<32x64xf32> -> vector<32x64xf32>
    %c0_12 = arith.constant 0 : index
    %c0_13 = arith.constant 0 : index
    %19 = vector.load %arg5[%c0_12, %c0_13] : memref<32x1xf32, #tpu.memory_space<vmem>>, vector<32x1xf32>
    %20 = vector.broadcast %19 : vector<32x1xf32> to vector<32x64xf32>
    %21 = arith.addf %18, %20 : vector<32x64xf32>
    %cst_14 = arith.constant 0.000000e+00 : f32
    %22 = vector.broadcast %cst_14 : f32 to vector<32x64xf32>
    %23 = arith.cmpf ogt, %21, %22 : vector<32x64xf32>
    %cst_15 = arith.constant 0.000000e+00 : f32
    %24 = vector.broadcast %cst_15 : f32 to vector<32x64xf32>
    %25 = arith.minimumf %21, %24 : vector<32x64xf32>
    %26 = math.exp %25 : vector<32x64xf32>
    %cst_16 = arith.constant 1.000000e+00 : f32
    %27 = vector.broadcast %cst_16 : f32 to vector<32x64xf32>
    %28 = arith.subf %26, %27 : vector<32x64xf32>
    %29 = arith.select %23, %21, %28 : vector<32x64xi1>, vector<32x64xf32>
    %c0_17 = arith.constant 0 : index
    %c0_18 = arith.constant 0 : index
    %30 = vector.load %arg6[%c0_17, %c0_18] : memref<32x32xbf16, #tpu.memory_space<vmem>>, vector<32x32xbf16>
    %31 = arith.truncf %29 : vector<32x64xf32> to vector<32x64xbf16>
    %cst_19 = arith.constant dense<0.000000e+00> : vector<32x64xf32>
    %32 = tpu.matmul %30, %31, %cst_19 {dimension_numbers = #tpu.dot_dimension_numbers<[1], [0], [0], [1], [0, 0, 1, 1], [], []>} : vector<32x32xbf16>, vector<32x64xbf16>, vector<32x64xf32> -> vector<32x64xf32>
    %c0_20 = arith.constant 0 : index
    %c0_21 = arith.constant 0 : index
    %33 = vector.load %arg7[%c0_20, %c0_21] : memref<32x1xf32, #tpu.memory_space<vmem>>, vector<32x1xf32>
    %34 = vector.broadcast %33 : vector<32x1xf32> to vector<32x64xf32>
    %35 = arith.addf %32, %34 : vector<32x64xf32>
    %cst_22 = arith.constant 0.000000e+00 : f32
    %36 = vector.broadcast %cst_22 : f32 to vector<32x64xf32>
    %37 = arith.cmpf ogt, %35, %36 : vector<32x64xf32>
    %cst_23 = arith.constant 0.000000e+00 : f32
    %38 = vector.broadcast %cst_23 : f32 to vector<32x64xf32>
    %39 = arith.minimumf %35, %38 : vector<32x64xf32>
    %40 = math.exp %39 : vector<32x64xf32>
    %cst_24 = arith.constant 1.000000e+00 : f32
    %41 = vector.broadcast %cst_24 : f32 to vector<32x64xf32>
    %42 = arith.subf %40, %41 : vector<32x64xf32>
    %43 = arith.select %37, %35, %42 : vector<32x64xi1>, vector<32x64xf32>
    %c0_25 = arith.constant 0 : index
    %c0_26 = arith.constant 0 : index
    %44 = vector.load %arg8[%c0_25, %c0_26] : memref<9x32xbf16, #tpu.memory_space<vmem>>, vector<9x32xbf16>
    %45 = arith.truncf %43 : vector<32x64xf32> to vector<32x64xbf16>
    %cst_27 = arith.constant dense<0.000000e+00> : vector<9x64xf32>
    %46 = tpu.matmul %44, %45, %cst_27 {dimension_numbers = #tpu.dot_dimension_numbers<[1], [0], [0], [1], [0, 0, 1, 1], [], []>} : vector<9x32xbf16>, vector<32x64xbf16>, vector<9x64xf32> -> vector<9x64xf32>
    %47 = vector.extract_strided_slice %46 {offsets = [0, 0], sizes = [1, 56], strides = [1, 1]} : vector<9x64xf32> to vector<1x56xf32>
    %c0_28 = arith.constant 0 : index
    %c0_29 = arith.constant 0 : index
    %48 = vector.load %arg9[%c0_28, %c0_29] : memref<1x1xf32, #tpu.memory_space<vmem>>, vector<1x1xf32>
    %49 = vector.broadcast %48 : vector<1x1xf32> to vector<1x56xf32>
    %50 = arith.addf %47, %49 : vector<1x56xf32>
    %51 = vector.extract_strided_slice %46 {offsets = [1, 1], sizes = [1, 56], strides = [1, 1]} : vector<9x64xf32> to vector<1x56xf32>
    %52 = arith.addf %50, %51 : vector<1x56xf32>
    %53 = vector.extract_strided_slice %46 {offsets = [2, 2], sizes = [1, 56], strides = [1, 1]} : vector<9x64xf32> to vector<1x56xf32>
    %54 = arith.addf %52, %53 : vector<1x56xf32>
    %55 = vector.extract_strided_slice %46 {offsets = [3, 3], sizes = [1, 56], strides = [1, 1]} : vector<9x64xf32> to vector<1x56xf32>
    %56 = arith.addf %54, %55 : vector<1x56xf32>
    %57 = vector.extract_strided_slice %46 {offsets = [4, 4], sizes = [1, 56], strides = [1, 1]} : vector<9x64xf32> to vector<1x56xf32>
    %58 = arith.addf %56, %57 : vector<1x56xf32>
    %59 = vector.extract_strided_slice %46 {offsets = [5, 5], sizes = [1, 56], strides = [1, 1]} : vector<9x64xf32> to vector<1x56xf32>
    %60 = arith.addf %58, %59 : vector<1x56xf32>
    %61 = vector.extract_strided_slice %46 {offsets = [6, 6], sizes = [1, 56], strides = [1, 1]} : vector<9x64xf32> to vector<1x56xf32>
    %62 = arith.addf %60, %61 : vector<1x56xf32>
    %63 = vector.extract_strided_slice %46 {offsets = [7, 7], sizes = [1, 56], strides = [1, 1]} : vector<9x64xf32> to vector<1x56xf32>
    %64 = arith.addf %62, %63 : vector<1x56xf32>
    %65 = vector.extract_strided_slice %46 {offsets = [8, 8], sizes = [1, 56], strides = [1, 1]} : vector<9x64xf32> to vector<1x56xf32>
    %66 = arith.addf %64, %65 : vector<1x56xf32>
    %67 = vector.extract_strided_slice %66 {offsets = [0, 0], sizes = [1, 24], strides = [1, 1]} : vector<1x56xf32> to vector<1x24xf32>
    %c0_30 = arith.constant 0 : index
    %c0_31 = arith.constant 0 : index
    %c0_32 = arith.constant 0 : index
    %68 = vector.load %arg15[%c0_30, %c0_31, %c0_32] : memref<1x2x24xf32, #tpu.memory_space<vmem>>, vector<1x1x24xf32>
    %69 = vector.shape_cast %68 : vector<1x1x24xf32> to vector<1x24xf32>
    %70 = vector.shape_cast %67 : vector<1x24xf32> to vector<1x1x24xf32>
    tpu.vector_store %arg15[%c0_30, %c0_31, %c0_32], %70 {strides = array<i32>} : memref<1x2x24xf32, #tpu.memory_space<vmem>>, vector<1x1x24xf32>,
    %71 = vector.extract_strided_slice %66 {offsets = [0, 32], sizes = [1, 24], strides = [1, 1]} : vector<1x56xf32> to vector<1x24xf32>
    %c0_33 = arith.constant 0 : index
    %c1 = arith.constant 1 : index
    %c0_34 = arith.constant 0 : index
    %72 = vector.load %arg15[%c0_33, %c1, %c0_34] : memref<1x2x24xf32, #tpu.memory_space<vmem>>, vector<1x1x24xf32>
    %73 = vector.shape_cast %72 : vector<1x1x24xf32> to vector<1x24xf32>
    %74 = vector.shape_cast %71 : vector<1x24xf32> to vector<1x1x24xf32>
    tpu.vector_store %arg15[%c0_33, %c1, %c0_34], %74 {strides = array<i32>} : memref<1x2x24xf32, #tpu.memory_space<vmem>>, vector<1x1x24xf32>,
    %c0_35 = arith.constant 0 : index
    %c0_36 = arith.constant 0 : index
    %c0_37 = arith.constant 0 : index
    %75 = vector.load %arg15[%c0_35, %c0_36, %c0_37] : memref<1x2x24xf32, #tpu.memory_space<vmem>>, vector<1x2x24xf32>
    %76 = vector.shape_cast %75 : vector<1x2x24xf32> to vector<2x24xf32>
    %cst_38 = arith.constant dense<0xFF800000> : vector<2xf32>
    %77 = vector.multi_reduction <maximumf>, %76, %cst_38 [1] : vector<2x24xf32> to vector<2xf32>
    %78 = vector.shape_cast %77 : vector<2xf32> to vector<2x1xf32>
    %79 = vector.broadcast %78 : vector<2x1xf32> to vector<2x24xf32>
    %80 = arith.subf %76, %79 : vector<2x24xf32>
    %81 = math.exp %80 : vector<2x24xf32>
    %cst_39 = arith.constant dense<0.000000e+00> : vector<2xf32>
    %82 = vector.multi_reduction <add>, %81, %cst_39 [1] : vector<2x24xf32> to vector<2xf32>
    %83 = vector.shape_cast %82 : vector<2xf32> to vector<2x1xf32>
    %84 = tpu.reciprocal %83 {approx = true} : vector<2x1xf32> -> vector<2x1xf32>
    %85 = vector.broadcast %84 : vector<2x1xf32> to vector<2x24xf32>
    %86 = arith.mulf %81, %85 : vector<2x24xf32>
    %c0_40 = arith.constant 0 : index
    %c0_41 = arith.constant 0 : index
    %c0_42 = arith.constant 0 : index
    %87 = vector.load %arg15[%c0_40, %c0_41, %c0_42] : memref<1x2x24xf32, #tpu.memory_space<vmem>>, vector<1x2x24xf32>
    %88 = vector.shape_cast %87 : vector<1x2x24xf32> to vector<2x24xf32>
    %89 = vector.shape_cast %86 : vector<2x24xf32> to vector<1x2x24xf32>
    tpu.vector_store %arg15[%c0_40, %c0_41, %c0_42], %89 {strides = array<i32>} : memref<1x2x24xf32, #tpu.memory_space<vmem>>, vector<1x2x24xf32>,
    %90 = vector.extract_strided_slice %1 {offsets = [0, 0], sizes = [8, 32], strides = [1, 1]} : vector<8x64xf32> to vector<8x32xf32>
    %cst_43 = arith.constant dense<0.000000e+00> : vector<8xf32>
    %91 = vector.multi_reduction <add>, %90, %cst_43 [1] : vector<8x32xf32> to vector<8xf32>
    %92 = vector.shape_cast %91 : vector<8xf32> to vector<8x1xf32>
    %cst_44 = arith.constant 3.200000e+01 : f32
    %93 = vector.broadcast %cst_44 : f32 to vector<8x1xf32>
    %94 = arith.divf %92, %93 : vector<8x1xf32>
    %c0_45 = arith.constant 0 : index
    %c0_46 = arith.constant 0 : index
    %95 = vector.load %arg17[%c0_45, %c0_46] : memref<8x2xf32, #tpu.memory_space<vmem>>, vector<8x1xf32>
    tpu.vector_store %arg17[%c0_45, %c0_46], %94 {strides = array<i32>} : memref<8x2xf32, #tpu.memory_space<vmem>>, vector<8x1xf32>,
    %96 = vector.extract_strided_slice %1 {offsets = [0, 32], sizes = [8, 32], strides = [1, 1]} : vector<8x64xf32> to vector<8x32xf32>
    %cst_47 = arith.constant dense<0.000000e+00> : vector<8xf32>
    %97 = vector.multi_reduction <add>, %96, %cst_47 [1] : vector<8x32xf32> to vector<8xf32>
    %98 = vector.shape_cast %97 : vector<8xf32> to vector<8x1xf32>
    %cst_48 = arith.constant 3.200000e+01 : f32
    %99 = vector.broadcast %cst_48 : f32 to vector<8x1xf32>
    %100 = arith.divf %98, %99 : vector<8x1xf32>
    %c0_49 = arith.constant 0 : index
    %c1_50 = arith.constant 1 : index
    %101 = vector.load %arg17[%c0_49, %c1_50] : memref<8x2xf32, #tpu.memory_space<vmem>>, vector<8x1xf32>
    tpu.vector_store %arg17[%c0_49, %c1_50], %100 {strides = array<i32>} : memref<8x2xf32, #tpu.memory_space<vmem>>, vector<8x1xf32>,
    %c0_51 = arith.constant 0 : index
    %c0_52 = arith.constant 0 : index
    %102 = vector.load %arg17[%c0_51, %c0_52] : memref<8x2xf32, #tpu.memory_space<vmem>>, vector<8x2xf32>
    %c0_53 = arith.constant 0 : index
    %c0_54 = arith.constant 0 : index
    %103 = vector.load %arg10[%c0_53, %c0_54] : memref<32x8xbf16, #tpu.memory_space<vmem>>, vector<32x8xbf16>
    %104 = arith.truncf %102 : vector<8x2xf32> to vector<8x2xbf16>
    %cst_55 = arith.constant dense<0.000000e+00> : vector<32x2xf32>
    %105 = tpu.matmul %103, %104, %cst_55 {dimension_numbers = #tpu.dot_dimension_numbers<[1], [0], [0], [1], [0, 0, 1, 1], [], []>} : vector<32x8xbf16>, vector<8x2xbf16>, vector<32x2xf32> -> vector<32x2xf32>
    %cst_56 = arith.constant 0.000000e+00 : f32
    %106 = vector.broadcast %cst_56 : f32 to vector<32x2xf32>
    %107 = arith.cmpf ogt, %105, %106 : vector<32x2xf32>
    %cst_57 = arith.constant 0.000000e+00 : f32
    %108 = vector.broadcast %cst_57 : f32 to vector<32x2xf32>
    %109 = arith.minimumf %105, %108 : vector<32x2xf32>
    %110 = math.exp %109 : vector<32x2xf32>
    %cst_58 = arith.constant 1.000000e+00 : f32
    %111 = vector.broadcast %cst_58 : f32 to vector<32x2xf32>
    %112 = arith.subf %110, %111 : vector<32x2xf32>
    %113 = arith.select %107, %105, %112 : vector<32x2xi1>, vector<32x2xf32>
    %c0_59 = arith.constant 0 : index
    %c0_60 = arith.constant 0 : index
    %114 = vector.load %arg11[%c0_59, %c0_60] : memref<32x32xbf16, #tpu.memory_space<vmem>>, vector<32x32xbf16>
    %115 = arith.truncf %113 : vector<32x2xf32> to vector<32x2xbf16>
    %cst_61 = arith.constant dense<0.000000e+00> : vector<32x2xf32>
    %116 = tpu.matmul %114, %115, %cst_61 {dimension_numbers = #tpu.dot_dimension_numbers<[1], [0], [0], [1], [0, 0, 1, 1], [], []>} : vector<32x32xbf16>, vector<32x2xbf16>, vector<32x2xf32> -> vector<32x2xf32>
    %cst_62 = arith.constant 0.000000e+00 : f32
    %117 = vector.broadcast %cst_62 : f32 to vector<32x2xf32>
    %118 = arith.cmpf ogt, %116, %117 : vector<32x2xf32>
    %cst_63 = arith.constant 0.000000e+00 : f32
    %119 = vector.broadcast %cst_63 : f32 to vector<32x2xf32>
    %120 = arith.minimumf %116, %119 : vector<32x2xf32>
    %121 = math.exp %120 : vector<32x2xf32>
    %cst_64 = arith.constant 1.000000e+00 : f32
    %122 = vector.broadcast %cst_64 : f32 to vector<32x2xf32>
    %123 = arith.subf %121, %122 : vector<32x2xf32>
    %124 = arith.select %118, %116, %123 : vector<32x2xi1>, vector<32x2xf32>
    %c0_65 = arith.constant 0 : index
    %c0_66 = arith.constant 0 : index
    %125 = vector.load %arg12[%c0_65, %c0_66] : memref<32x32xbf16, #tpu.memory_space<vmem>>, vector<32x32xbf16>
    %126 = arith.truncf %124 : vector<32x2xf32> to vector<32x2xbf16>
    %cst_67 = arith.constant dense<0.000000e+00> : vector<32x2xf32>
    %127 = tpu.matmul %125, %126, %cst_67 {dimension_numbers = #tpu.dot_dimension_numbers<[1], [0], [0], [1], [0, 0, 1, 1], [], []>} : vector<32x32xbf16>, vector<32x2xbf16>, vector<32x2xf32> -> vector<32x2xf32>
    %cst_68 = arith.constant 0.000000e+00 : f32
    %128 = vector.broadcast %cst_68 : f32 to vector<32x2xf32>
    %129 = arith.cmpf ogt, %127, %128 : vector<32x2xf32>
    %cst_69 = arith.constant 0.000000e+00 : f32
    %130 = vector.broadcast %cst_69 : f32 to vector<32x2xf32>
    %131 = arith.minimumf %127, %130 : vector<32x2xf32>
    %132 = math.exp %131 : vector<32x2xf32>
    %cst_70 = arith.constant 1.000000e+00 : f32
    %133 = vector.broadcast %cst_70 : f32 to vector<32x2xf32>
    %134 = arith.subf %132, %133 : vector<32x2xf32>
    %135 = arith.select %129, %127, %134 : vector<32x2xi1>, vector<32x2xf32>
    %c0_71 = arith.constant 0 : index
    %c0_72 = arith.constant 0 : index
    %136 = vector.load %arg13[%c0_71, %c0_72] : memref<1x32xbf16, #tpu.memory_space<vmem>>, vector<1x32xbf16>
    %137 = arith.truncf %135 : vector<32x2xf32> to vector<32x2xbf16>
    %cst_73 = arith.constant dense<0.000000e+00> : vector<1x2xf32>
    %138 = tpu.matmul %136, %137, %cst_73 {dimension_numbers = #tpu.dot_dimension_numbers<[1], [0], [0], [1], [0, 0, 1, 1], [], []>} : vector<1x32xbf16>, vector<32x2xbf16>, vector<1x2xf32> -> vector<1x2xf32>
    %c0_74 = arith.constant 0 : index
    %c0_75 = arith.constant 0 : index
    %139 = vector.load %arg14[%c0_74, %c0_75] : memref<1x1xf32, #tpu.memory_space<vmem>>, vector<1x1xf32>
    %140 = vector.broadcast %139 : vector<1x1xf32> to vector<1x2xf32>
    %141 = arith.addf %138, %140 : vector<1x2xf32>
    %cst_76 = arith.constant 2.000000e+01 : f32
    %142 = vector.broadcast %cst_76 : f32 to vector<1x2xf32>
    %143 = arith.cmpf ogt, %141, %142 : vector<1x2xf32>
    %cst_77 = arith.constant 2.000000e+01 : f32
    %144 = vector.broadcast %cst_77 : f32 to vector<1x2xf32>
    %145 = arith.minimumf %141, %144 : vector<1x2xf32>
    %146 = math.exp %145 : vector<1x2xf32>
    %cst_78 = arith.constant 1.000000e+00 : f32
    %147 = vector.broadcast %cst_78 : f32 to vector<1x2xf32>
    %148 = arith.addf %147, %146 : vector<1x2xf32>
    %149 = math.log %148 : vector<1x2xf32>
    %150 = arith.select %143, %141, %149 : vector<1x2xi1>, vector<1x2xf32>
    %c0_79 = arith.constant 0 : index
    %c0_80 = arith.constant 0 : index
    %c0_81 = arith.constant 0 : index
    %151 = vector.load %arg16[%c0_79, %c0_80, %c0_81] : memref<1x1x2xf32, #tpu.memory_space<vmem>>, vector<1x1x2xf32>
    %152 = vector.shape_cast %151 : vector<1x1x2xf32> to vector<1x2xf32>
    %153 = vector.shape_cast %150 : vector<1x2xf32> to vector<1x1x2xf32>
    tpu.vector_store %arg16[%c0_79, %c0_80, %c0_81], %153 {strides = array<i32>} : memref<1x1x2xf32, #tpu.memory_space<vmem>>, vector<1x1x2xf32>,
    return
  }
  func.func @transform_0(%arg0: i32) -> (i32, i32, i32) {
    %c0_i32 = arith.constant 0 : i32
    %c0_i32_0 = arith.constant 0 : i32
    %c0_i32_1 = arith.constant 0 : i32
    return %arg0, %c0_i32, %c0_i32_0 : i32, i32, i32
  }
  func.func @transform_1(%arg0: i32) -> (i32, i32) {
    %c0_i32 = arith.constant 0 : i32
    %c0_i32_0 = arith.constant 0 : i32
    %c0_i32_1 = arith.constant 0 : i32
    return %c0_i32, %c0_i32_0 : i32, i32
  }
  func.func @transform_2(%arg0: i32) -> (i32, i32) {
    %c0_i32 = arith.constant 0 : i32
    %c0_i32_0 = arith.constant 0 : i32
    %c0_i32_1 = arith.constant 0 : i32
    return %c0_i32, %c0_i32_0 : i32, i32
  }
  func.func @transform_3(%arg0: i32) -> (i32, i32) {
    %c0_i32 = arith.constant 0 : i32
    %c0_i32_0 = arith.constant 0 : i32
    %c0_i32_1 = arith.constant 0 : i32
    return %c0_i32, %c0_i32_0 : i32, i32
  }
  func.func @transform_4(%arg0: i32) -> (i32, i32) {
    %c0_i32 = arith.constant 0 : i32
    %c0_i32_0 = arith.constant 0 : i32
    %c0_i32_1 = arith.constant 0 : i32
    return %c0_i32, %c0_i32_0 : i32, i32
  }
  func.func @transform_5(%arg0: i32) -> (i32, i32) {
    %c0_i32 = arith.constant 0 : i32
    %c0_i32_0 = arith.constant 0 : i32
    %c0_i32_1 = arith.constant 0 : i32
    return %c0_i32, %c0_i32_0 : i32, i32
  }
  func.func @transform_6(%arg0: i32) -> (i32, i32) {
    %c0_i32 = arith.constant 0 : i32
    %c0_i32_0 = arith.constant 0 : i32
    %c0_i32_1 = arith.constant 0 : i32
    return %c0_i32, %c0_i32_0 : i32, i32
  }
  func.func @transform_7(%arg0: i32) -> (i32, i32) {
    %c0_i32 = arith.constant 0 : i32
    %c0_i32_0 = arith.constant 0 : i32
    %c0_i32_1 = arith.constant 0 : i32
    return %c0_i32, %c0_i32_0 : i32, i32
  }
  func.func @transform_8(%arg0: i32) -> (i32, i32) {
    %c0_i32 = arith.constant 0 : i32
    %c0_i32_0 = arith.constant 0 : i32
    %c0_i32_1 = arith.constant 0 : i32
    return %c0_i32, %c0_i32_0 : i32, i32
  }
  func.func @transform_9(%arg0: i32) -> (i32, i32) {
    %c0_i32 = arith.constant 0 : i32
    %c0_i32_0 = arith.constant 0 : i32
    %c0_i32_1 = arith.constant 0 : i32
    return %c0_i32, %c0_i32_0 : i32, i32
  }
  func.func @transform_10(%arg0: i32) -> (i32, i32) {
    %c0_i32 = arith.constant 0 : i32
    %c0_i32_0 = arith.constant 0 : i32
    %c0_i32_1 = arith.constant 0 : i32
    return %c0_i32, %c0_i32_0 : i32, i32
  }
  func.func @transform_11(%arg0: i32) -> (i32, i32) {
    %c0_i32 = arith.constant 0 : i32
    %c0_i32_0 = arith.constant 0 : i32
    %c0_i32_1 = arith.constant 0 : i32
    return %c0_i32, %c0_i32_0 : i32, i32
  }
  func.func @transform_12(%arg0: i32) -> (i32, i32) {
    %c0_i32 = arith.constant 0 : i32
    %c0_i32_0 = arith.constant 0 : i32
    %c0_i32_1 = arith.constant 0 : i32
    return %c0_i32, %c0_i32_0 : i32, i32
  }
  func.func @transform_13(%arg0: i32) -> (i32, i32) {
    %c0_i32 = arith.constant 0 : i32
    %c0_i32_0 = arith.constant 0 : i32
    %c0_i32_1 = arith.constant 0 : i32
    return %c0_i32, %c0_i32_0 : i32, i32
  }
  func.func @transform_14(%arg0: i32) -> (i32, i32, i32) {
    %c0_i32 = arith.constant 0 : i32
    %c0_i32_0 = arith.constant 0 : i32
    %c0_i32_1 = arith.constant 0 : i32
    return %arg0, %c0_i32, %c0_i32_0 : i32, i32, i32
  }
  func.func @transform_15(%arg0: i32) -> (i32, i32, i32) {
    %c0_i32 = arith.constant 0 : i32
    %c0_i32_0 = arith.constant 0 : i32
    %c0_i32_1 = arith.constant 0 : i32
    return %arg0, %c0_i32, %c0_i32_0 : i32, i32, i32
  }
}

</mosaic_0001>

<llo_original>
// kernel: tpu_custom_call.1
$region0: #{tpu_custom_call.1}
  #allocation0 [shape = 'u32[]', space=smem, size = 0x4, offset = 0x4, fixed_abs, tag = 'smem constant byte address 0x4 - core index']
  #allocation1 [shape = 'u32[72,128]{1,0:T(1,128)}', space=vmem, size = 0x9000, scoped, tag = 'internal scratch']
  #allocation2 [shape = 'f32[8,2]{1,0:T(8,128)}', space=vmem, size = 0x1000, scoped, tag = 'scratch operand']
  #allocation3 [shape = 'f32[1,1]{1,0:T(1,128)S(1)}', space=vmem, size = 0x200, scoped, tag = 'scoped memory for tpu_custom_call.1']
  #allocation4 [shape = 'f32[1,1]{1,0:T(1,128)S(1)}', space=vmem, size = 0x200, scoped, tag = 'scoped memory for tpu_custom_call.1']
  %s0 = inlined_call_operand.vmem [shape: f32[2,8,64], index: 0, kind: input, shape index: {}]
  %s1 = inlined_call_operand.vmem [shape: bf16[32,8], index: 1, kind: input, shape index: {}]
  %s2 = inlined_call_operand.vmem [shape: f32[32,1], index: 2, kind: input, shape index: {}]
  %s3 = inlined_call_operand.vmem [shape: bf16[32,32], index: 3, kind: input, shape index: {}]
  %s4 = inlined_call_operand.vmem [shape: f32[32,1], index: 4, kind: input, shape index: {}]
  %s5 = inlined_call_operand.vmem [shape: bf16[32,32], index: 5, kind: input, shape index: {}]
  %s6 = inlined_call_operand.vmem [shape: f32[32,1], index: 6, kind: input, shape index: {}]
  %s7 = inlined_call_operand.vmem [shape: bf16[9,32], index: 7, kind: input, shape index: {}]
  %s8 = inlined_call_operand.<no memory space> [shape: f32[1,1], index: 8, kind: input, shape index: {}]
  %s9 = inlined_call_operand.vmem [shape: bf16[32,8], index: 9, kind: input, shape index: {}]
  %s10 = inlined_call_operand.vmem [shape: bf16[32,32], index: 10, kind: input, shape index: {}]
  %s11 = inlined_call_operand.vmem [shape: bf16[32,32], index: 11, kind: input, shape index: {}]
  %s12 = inlined_call_operand.vmem [shape: bf16[1,32], index: 12, kind: input, shape index: {}]
  %s13 = inlined_call_operand.<no memory space> [shape: f32[1,1], index: 13, kind: input, shape index: {}]
  %s14 = inlined_call_operand.hbm [shape: f32[2,2,24], index: 14, kind: output, shape index: {0}]
  %s15 = inlined_call_operand.hbm [shape: f32[2,1,2], index: 15, kind: output, shape index: {1}]
  %16 = xla_tuple %s14, %s15
  %s17 = sld [smem:[#allocation0]]
  $region97: #{tpu_custom_call.1} parent=0
    _
  %s19 = ssub.s32 1, %s17
  %s20 = scalar_select 0, %s19, %s17
  %v21 = vstv %s8
  %22 = vst [vmem:[#allocation3] sm:$0x1] %v21
  %v23 = vstv %s13
  %24 = vst [vmem:[#allocation4] sm:$0x1] %v23
  $region1: #{tpu_custom_call.1} parent=0
    #allocation5 [shape = 'u8[2048]{0}', space=vmem, size = 0x800, scoped, tag = 'output window, operand 0']
    #allocation6 [shape = 's32[2]{0}', space=sflag, size = 0x8, scoped, tag = 'scoped memory for tpu_custom_call.1']
    #allocation7 [shape = 'u8[1024]{0}', space=vmem, size = 0x400, scoped, tag = 'output window, operand 1']
    #allocation8 [shape = 's32[2]{0}', space=sflag, size = 0x8, scoped, tag = 'scoped memory for tpu_custom_call.1']
    %25 = vsyncpa [#allocation6], 0
    %s26 = scalar_lea.sflag [#allocation6], 1
    %27 = vsyncpa %s26, 0
    %28 = vsyncpa [#allocation8], 0
    %s29 = scalar_lea.sflag [#allocation8], 1
    %30 = vsyncpa %s29, 0
    loop: start=0, step=1, limit=4
    $region2: #{tpu_custom_call.1} parent=1 // loop_pre_header
      _
    $region3: #{tpu_custom_call.1} parent=1 // loop_header
      %s32 = sphi 0, %s36
      %p33 = scmp.ge.s32.totalorder %s32, 4
      %s42 = sphi 0, %s44
      %s45 = sphi 0, %s42
      %s46 = sphi 0, %s45
      %s62 = sphi 0, %s46
      %s66 = sphi 0, %s66
      %s68 = sphi 0, %s66
      %s69 = sphi 0, %s68
      %s83 = sphi 0, %s69
      %s87 = sphi 0, %s87
      %s89 = sphi 0, %s87
      %s90 = sphi 0, %s89
      %s104 = sphi 0, %s90
      %s108 = sphi 0, %s108
      %s110 = sphi 0, %s108
      %s111 = sphi 0, %s110
      %s125 = sphi 0, %s111
      %s129 = sphi 0, %s129
      %s131 = sphi 0, %s129
      %s132 = sphi 0, %s131
      %s146 = sphi 0, %s132
      %s150 = sphi 0, %s150
      %s152 = sphi 0, %s150
      %s153 = sphi 0, %s152
      %s167 = sphi 0, %s153
      %s171 = sphi 0, %s171
      %s173 = sphi 0, %s171
      %s174 = sphi 0, %s173
      %s188 = sphi 0, %s174
      %s192 = sphi 0, %s192
      %s194 = sphi 0, %s192
      %s195 = sphi 0, %s194
      %s209 = sphi 0, %s195
      %s213 = sphi 0, %s213
      %s215 = sphi 0, %s213
      %s216 = sphi 0, %s215
      %s230 = sphi 0, %s216
      %s234 = sphi 0, %s234
      %s236 = sphi 0, %s234
      %s237 = sphi 0, %s236
      %s251 = sphi 0, %s237
      %s255 = sphi 0, %s255
      %s257 = sphi 0, %s255
      %s258 = sphi 0, %s257
      %s272 = sphi 0, %s258
      %s276 = sphi 0, %s276
      %s278 = sphi 0, %s276
      %s279 = sphi 0, %s278
      %s293 = sphi 0, %s279
      %s297 = sphi 0, %s297
      %s299 = sphi 0, %s297
      %s300 = sphi 0, %s299
      %s314 = sphi 0, %s300
      %s318 = sphi 0, %s318
      %s320 = sphi 0, %s318
      %s321 = sphi 0, %s320
      %s335 = sphi 0, %s321
      %s341 = sphi 0, %s343
      %s344 = sphi 0, %s341
      %s345 = sphi 0, %s344
      %s361 = sphi 0, %s345
      %s367 = sphi 0, %s369
      %s370 = sphi 0, %s367
      %s371 = sphi 0, %s370
      %s387 = sphi 0, %s371
    $region4: #{tpu_custom_call.1} parent=1 // loop_header_branch
      %35 = sbr.rel (%p33) target = $region8
    $region5: #{tpu_custom_call.1} parent=1 // loop_body
      %s37 = ssub.s32 %s32, 1
      %s38 = ssub.s32 %s32, 2
      %s39 = sadd.s32 %s32, 1
      %s40 = ssub.s32 %s32, %s39
      %p41 = scmp.eq.s32.totalorder %s40, 0
      %s43 = sadd.s32 %s42, 1
      %s44 = scalar_select %p41, %s42, %s43
      %p47 = pneg %p41
      %p48 = scmp.eq.s32.totalorder %s32, 1
      %p49 = por %p47, %p48
      %p50 = scmp.ne.s32.totalorder %s42, %s45
      %p51 = scmp.eq.s32.totalorder %s32, 0
      %p52 = por %p50, %p51
      %p53 = scmp.ne.s32.totalorder %s42, %s45
      %p54 = scmp.eq.s32.totalorder %s37, 1
      %p55 = por %p53, %p54
      %p56 = scmp.ne.s32.totalorder %s45, %s46
      %p57 = scmp.eq.s32.totalorder %s37, 0
      %p58 = por %p56, %p57
      %p59 = scmp.ne.s32.totalorder %s45, %s46
      %p60 = scmp.eq.s32.totalorder %s38, 1
      %p61 = por %p59, %p60
      %p63 = scmp.ne.s32.totalorder %s46, %s62
      %p64 = scmp.eq.s32.totalorder %s38, 0
      %p65 = por %p63, %p64
      %s67 = sadd.s32 %s66, 1
      %p70 = scmp.eq.s32.totalorder %s32, 1
      %p71 = scmp.ne.s32.totalorder %s66, %s68
      %p72 = scmp.eq.s32.totalorder %s32, 0
      %p73 = por %p71, %p72
      %p74 = scmp.ne.s32.totalorder %s66, %s68
      %p75 = scmp.eq.s32.totalorder %s37, 1
      %p76 = por %p74, %p75
      %p77 = scmp.ne.s32.totalorder %s68, %s69
      %p78 = scmp.eq.s32.totalorder %s37, 0
      %p79 = por %p77, %p78
      %p80 = scmp.ne.s32.totalorder %s68, %s69
      %p81 = scmp.eq.s32.totalorder %s38, 1
      %p82 = por %p80, %p81
      %p84 = scmp.ne.s32.totalorder %s69, %s83
      %p85 = scmp.eq.s32.totalorder %s38, 0
      %p86 = por %p84, %p85
      %s88 = sadd.s32 %s87, 1
      %p91 = scmp.eq.s32.totalorder %s32, 1
      %p92 = scmp.ne.s32.totalorder %s87, %s89
      %p93 = scmp.eq.s32.totalorder %s32, 0
      %p94 = por %p92, %p93
      %p95 = scmp.ne.s32.totalorder %s87, %s89
      %p96 = scmp.eq.s32.totalorder %s37, 1
      %p97 = por %p95, %p96
      %p98 = scmp.ne.s32.totalorder %s89, %s90
      %p99 = scmp.eq.s32.totalorder %s37, 0
      %p100 = por %p98, %p99
      %p101 = scmp.ne.s32.totalorder %s89, %s90
      %p102 = scmp.eq.s32.totalorder %s38, 1
      %p103 = por %p101, %p102
      %p105 = scmp.ne.s32.totalorder %s90, %s104
      %p106 = scmp.eq.s32.totalorder %s38, 0
      %p107 = por %p105, %p106
      %s109 = sadd.s32 %s108, 1
      %p112 = scmp.eq.s32.totalorder %s32, 1
      %p113 = scmp.ne.s32.totalorder %s108, %s110
      %p114 = scmp.eq.s32.totalorder %s32, 0
      %p115 = por %p113, %p114
      %p116 = scmp.ne.s32.totalorder %s108, %s110
      %p117 = scmp.eq.s32.totalorder %s37, 1
      %p118 = por %p116, %p117
      %p119 = scmp.ne.s32.totalorder %s110, %s111
      %p120 = scmp.eq.s32.totalorder %s37, 0
      %p121 = por %p119, %p120
      %p122 = scmp.ne.s32.totalorder %s110, %s111
      %p123 = scmp.eq.s32.totalorder %s38, 1
      %p124 = por %p122, %p123
      %p126 = scmp.ne.s32.totalorder %s111, %s125
      %p127 = scmp.eq.s32.totalorder %s38, 0
      %p128 = por %p126, %p127
      %s130 = sadd.s32 %s129, 1
      %p133 = scmp.eq.s32.totalorder %s32, 1
      %p134 = scmp.ne.s32.totalorder %s129, %s131
      %p135 = scmp.eq.s32.totalorder %s32, 0
      %p136 = por %p134, %p135
      %p137 = scmp.ne.s32.totalorder %s129, %s131
      %p138 = scmp.eq.s32.totalorder %s37, 1
      %p139 = por %p137, %p138
      %p140 = scmp.ne.s32.totalorder %s131, %s132
      %p141 = scmp.eq.s32.totalorder %s37, 0
      %p142 = por %p140, %p141
      %p143 = scmp.ne.s32.totalorder %s131, %s132
      %p144 = scmp.eq.s32.totalorder %s38, 1
      %p145 = por %p143, %p144
      %p147 = scmp.ne.s32.totalorder %s132, %s146
      %p148 = scmp.eq.s32.totalorder %s38, 0
      %p149 = por %p147, %p148
      %s151 = sadd.s32 %s150, 1
      %p154 = scmp.eq.s32.totalorder %s32, 1
      %p155 = scmp.ne.s32.totalorder %s150, %s152
      %p156 = scmp.eq.s32.totalorder %s32, 0
      %p157 = por %p155, %p156
      %p158 = scmp.ne.s32.totalorder %s150, %s152
      %p159 = scmp.eq.s32.totalorder %s37, 1
      %p160 = por %p158, %p159
      %p161 = scmp.ne.s32.totalorder %s152, %s153
      %p162 = scmp.eq.s32.totalorder %s37, 0
      %p163 = por %p161, %p162
      %p164 = scmp.ne.s32.totalorder %s152, %s153
      %p165 = scmp.eq.s32.totalorder %s38, 1
      %p166 = por %p164, %p165
      %p168 = scmp.ne.s32.totalorder %s153, %s167
      %p169 = scmp.eq.s32.totalorder %s38, 0
      %p170 = por %p168, %p169
      %s172 = sadd.s32 %s171, 1
      %p175 = scmp.eq.s32.totalorder %s32, 1
      %p176 = scmp.ne.s32.totalorder %s171, %s173
      %p177 = scmp.eq.s32.totalorder %s32, 0
      %p178 = por %p176, %p177
      %p179 = scmp.ne.s32.totalorder %s171, %s173
      %p180 = scmp.eq.s32.totalorder %s37, 1
      %p181 = por %p179, %p180
      %p182 = scmp.ne.s32.totalorder %s173, %s174
      %p183 = scmp.eq.s32.totalorder %s37, 0
      %p184 = por %p182, %p183
      %p185 = scmp.ne.s32.totalorder %s173, %s174
      %p186 = scmp.eq.s32.totalorder %s38, 1
      %p187 = por %p185, %p186
      %p189 = scmp.ne.s32.totalorder %s174, %s188
      %p190 = scmp.eq.s32.totalorder %s38, 0
      %p191 = por %p189, %p190
      %s193 = sadd.s32 %s192, 1
      %p196 = scmp.eq.s32.totalorder %s32, 1
      %p197 = scmp.ne.s32.totalorder %s192, %s194
      %p198 = scmp.eq.s32.totalorder %s32, 0
      %p199 = por %p197, %p198
      %p200 = scmp.ne.s32.totalorder %s192, %s194
      %p201 = scmp.eq.s32.totalorder %s37, 1
      %p202 = por %p200, %p201
      %p203 = scmp.ne.s32.totalorder %s194, %s195
      %p204 = scmp.eq.s32.totalorder %s37, 0
      %p205 = por %p203, %p204
      %p206 = scmp.ne.s32.totalorder %s194, %s195
      %p207 = scmp.eq.s32.totalorder %s38, 1
      %p208 = por %p206, %p207
      %p210 = scmp.ne.s32.totalorder %s195, %s209
      %p211 = scmp.eq.s32.totalorder %s38, 0
      %p212 = por %p210, %p211
      %s214 = sadd.s32 %s213, 1
      %p217 = scmp.eq.s32.totalorder %s32, 1
      %p218 = scmp.ne.s32.totalorder %s213, %s215
      %p219 = scmp.eq.s32.totalorder %s32, 0
      %p220 = por %p218, %p219
      %p221 = scmp.ne.s32.totalorder %s213, %s215
      %p222 = scmp.eq.s32.totalorder %s37, 1
      %p223 = por %p221, %p222
      %p224 = scmp.ne.s32.totalorder %s215, %s216
      %p225 = scmp.eq.s32.totalorder %s37, 0
      %p226 = por %p224, %p225
      %p227 = scmp.ne.s32.totalorder %s215, %s216
      %p228 = scmp.eq.s32.totalorder %s38, 1
      %p229 = por %p227, %p228
      %p231 = scmp.ne.s32.totalorder %s216, %s230
      %p232 = scmp.eq.s32.totalorder %s38, 0
      %p233 = por %p231, %p232
      %s235 = sadd.s32 %s234, 1
      %p238 = scmp.eq.s32.totalorder %s32, 1
      %p239 = scmp.ne.s32.totalorder %s234, %s236
      %p240 = scmp.eq.s32.totalorder %s32, 0
      %p241 = por %p239, %p240
      %p242 = scmp.ne.s32.totalorder %s234, %s236
      %p243 = scmp.eq.s32.totalorder %s37, 1
      %p244 = por %p242, %p243
      %p245 = scmp.ne.s32.totalorder %s236, %s237
      %p246 = scmp.eq.s32.totalorder %s37, 0
      %p247 = por %p245, %p246
      %p248 = scmp.ne.s32.totalorder %s236, %s237
      %p249 = scmp.eq.s32.totalorder %s38, 1
      %p250 = por %p248, %p249
      %p252 = scmp.ne.s32.totalorder %s237, %s251
      %p253 = scmp.eq.s32.totalorder %s38, 0
      %p254 = por %p252, %p253
      %s256 = sadd.s32 %s255, 1
      %p259 = scmp.eq.s32.totalorder %s32, 1
      %p260 = scmp.ne.s32.totalorder %s255, %s257
      %p261 = scmp.eq.s32.totalorder %s32, 0
      %p262 = por %p260, %p261
      %p263 = scmp.ne.s32.totalorder %s255, %s257
      %p264 = scmp.eq.s32.totalorder %s37, 1
      %p265 = por %p263, %p264
      %p266 = scmp.ne.s32.totalorder %s257, %s258
      %p267 = scmp.eq.s32.totalorder %s37, 0
      %p268 = por %p266, %p267
      %p269 = scmp.ne.s32.totalorder %s257, %s258
      %p270 = scmp.eq.s32.totalorder %s38, 1
      %p271 = por %p269, %p270
      %p273 = scmp.ne.s32.totalorder %s258, %s272
      %p274 = scmp.eq.s32.totalorder %s38, 0
      %p275 = por %p273, %p274
      %s277 = sadd.s32 %s276, 1
      %p280 = scmp.eq.s32.totalorder %s32, 1
      %p281 = scmp.ne.s32.totalorder %s276, %s278
      %p282 = scmp.eq.s32.totalorder %s32, 0
      %p283 = por %p281, %p282
      %p284 = scmp.ne.s32.totalorder %s276, %s278
      %p285 = scmp.eq.s32.totalorder %s37, 1
      %p286 = por %p284, %p285
      %p287 = scmp.ne.s32.totalorder %s278, %s279
      %p288 = scmp.eq.s32.totalorder %s37, 0
      %p289 = por %p287, %p288
      %p290 = scmp.ne.s32.totalorder %s278, %s279
      %p291 = scmp.eq.s32.totalorder %s38, 1
      %p292 = por %p290, %p291
      %p294 = scmp.ne.s32.totalorder %s279, %s293
      %p295 = scmp.eq.s32.totalorder %s38, 0
      %p296 = por %p294, %p295
      %s298 = sadd.s32 %s297, 1
      %p301 = scmp.eq.s32.totalorder %s32, 1
      %p302 = scmp.ne.s32.totalorder %s297, %s299
      %p303 = scmp.eq.s32.totalorder %s32, 0
      %p304 = por %p302, %p303
      %p305 = scmp.ne.s32.totalorder %s297, %s299
      %p306 = scmp.eq.s32.totalorder %s37, 1
      %p307 = por %p305, %p306
      %p308 = scmp.ne.s32.totalorder %s299, %s300
      %p309 = scmp.eq.s32.totalorder %s37, 0
      %p310 = por %p308, %p309
      %p311 = scmp.ne.s32.totalorder %s299, %s300
      %p312 = scmp.eq.s32.totalorder %s38, 1
      %p313 = por %p311, %p312
      %p315 = scmp.ne.s32.totalorder %s300, %s314
      %p316 = scmp.eq.s32.totalorder %s38, 0
      %p317 = por %p315, %p316
      %s319 = sadd.s32 %s318, 1
      %p322 = scmp.eq.s32.totalorder %s32, 1
      %p323 = scmp.ne.s32.totalorder %s318, %s320
      %p324 = scmp.eq.s32.totalorder %s32, 0
      %p325 = por %p323, %p324
      %p326 = scmp.ne.s32.totalorder %s318, %s320
      %p327 = scmp.eq.s32.totalorder %s37, 1
      %p328 = por %p326, %p327
      %p329 = scmp.ne.s32.totalorder %s320, %s321
      %p330 = scmp.eq.s32.totalorder %s37, 0
      %p331 = por %p329, %p330
      %p332 = scmp.ne.s32.totalorder %s320, %s321
      %p333 = scmp.eq.s32.totalorder %s38, 1
      %p334 = por %p332, %p333
      %p336 = scmp.ne.s32.totalorder %s321, %s335
      %p337 = scmp.eq.s32.totalorder %s38, 0
      %p338 = por %p336, %p337
      %s339 = ssub.s32 %s32, %s39
      %p340 = scmp.eq.s32.totalorder %s339, 0
      %s342 = sadd.s32 %s341, 1
      %s343 = scalar_select %p340, %s341, %s342
      %p346 = pneg %p340
      %p347 = scmp.eq.s32.totalorder %s32, 1
      %p348 = por %p346, %p347
      %p349 = scmp.ne.s32.totalorder %s341, %s344
      %p350 = scmp.eq.s32.totalorder %s32, 0
      %p351 = por %p349, %p350
      %p352 = scmp.ne.s32.totalorder %s341, %s344
      %p353 = scmp.eq.s32.totalorder %s37, 1
      %p354 = por %p352, %p353
      %p355 = scmp.ne.s32.totalorder %s344, %s345
      %p356 = scmp.eq.s32.totalorder %s37, 0
      %p357 = por %p355, %p356
      %p358 = scmp.ne.s32.totalorder %s344, %s345
      %p359 = scmp.eq.s32.totalorder %s38, 1
      %p360 = por %p358, %p359
      %p362 = scmp.ne.s32.totalorder %s345, %s361
      %p363 = scmp.eq.s32.totalorder %s38, 0
      %p364 = por %p362, %p363
      %s365 = ssub.s32 %s32, %s39
      %p366 = scmp.eq.s32.totalorder %s365, 0
      %s368 = sadd.s32 %s367, 1
      %s369 = scalar_select %p366, %s367, %s368
      %p372 = pneg %p366
      %p373 = scmp.eq.s32.totalorder %s32, 1
      %p374 = por %p372, %p373
      %p375 = scmp.ne.s32.totalorder %s367, %s370
      %p376 = scmp.eq.s32.totalorder %s32, 0
      %p377 = por %p375, %p376
      %p378 = scmp.ne.s32.totalorder %s367, %s370
      %p379 = scmp.eq.s32.totalorder %s37, 1
      %p380 = por %p378, %p379
      %p381 = scmp.ne.s32.totalorder %s370, %s371
      %p382 = scmp.eq.s32.totalorder %s37, 0
      %p383 = por %p381, %p382
      %p384 = scmp.ne.s32.totalorder %s370, %s371
      %p385 = scmp.eq.s32.totalorder %s38, 1
      %p386 = por %p384, %p385
      %p388 = scmp.ne.s32.totalorder %s371, %s387
      %p389 = scmp.eq.s32.totalorder %s38, 0
      %p390 = por %p388, %p389
      %p391 = scmp.le.s32.totalorder 1, %s32
      %p392 = scmp.lt.s32.totalorder %s32, 3
      %p393 = pnand %p391, %p392
      %p394 = pneg %p393
      // Predicated region
      $region9: #{tpu_custom_call.1} parent=5 // pred_check
        _
      $region10: #{tpu_custom_call.1} parent=5 // pred_check_branch
        %396 = sbr.rel (%p393) target = $region12
      $region11: #{tpu_custom_call.1} parent=5 // pred_region
        %s397 = ssub.s32 %s32, 1
        // Predicated region
        $region13: #{tpu_custom_call.1} parent=11 // pred_check
          %p398 = pneg %p79
        $region14: #{tpu_custom_call.1} parent=11 // pred_check_branch
          %400 = sbr.rel (%p398) target = $region16
        $region15: #{tpu_custom_call.1} parent=11 // pred_region
          _
        $region16: #{tpu_custom_call.1} parent=11 // pred_fallthru
          _
        // Predicated region
        $region17: #{tpu_custom_call.1} parent=11 // pred_check
          %p401 = pneg %p100
        $region18: #{tpu_custom_call.1} parent=11 // pred_check_branch
          %403 = sbr.rel (%p401) target = $region20
        $region19: #{tpu_custom_call.1} parent=11 // pred_region
          _
        $region20: #{tpu_custom_call.1} parent=11 // pred_fallthru
          _
        // Predicated region
        $region21: #{tpu_custom_call.1} parent=11 // pred_check
          %p404 = pneg %p121
        $region22: #{tpu_custom_call.1} parent=11 // pred_check_branch
          %406 = sbr.rel (%p404) target = $region24
        $region23: #{tpu_custom_call.1} parent=11 // pred_region
          _
        $region24: #{tpu_custom_call.1} parent=11 // pred_fallthru
          _
        // Predicated region
        $region25: #{tpu_custom_call.1} parent=11 // pred_check
          %p407 = pneg %p142
        $region26: #{tpu_custom_call.1} parent=11 // pred_check_branch
          %409 = sbr.rel (%p407) target = $region28
        $region27: #{tpu_custom_call.1} parent=11 // pred_region
          _
        $region28: #{tpu_custom_call.1} parent=11 // pred_fallthru
          _
        // Predicated region
        $region29: #{tpu_custom_call.1} parent=11 // pred_check
          %p410 = pneg %p163
        $region30: #{tpu_custom_call.1} parent=11 // pred_check_branch
          %412 = sbr.rel (%p410) target = $region32
        $region31: #{tpu_custom_call.1} parent=11 // pred_region
          _
        $region32: #{tpu_custom_call.1} parent=11 // pred_fallthru
          _
        // Predicated region
        $region33: #{tpu_custom_call.1} parent=11 // pred_check
          %p413 = pneg %p184
        $region34: #{tpu_custom_call.1} parent=11 // pred_check_branch
          %415 = sbr.rel (%p413) target = $region36
        $region35: #{tpu_custom_call.1} parent=11 // pred_region
          _
        $region36: #{tpu_custom_call.1} parent=11 // pred_fallthru
          _
        // Predicated region
        $region37: #{tpu_custom_call.1} parent=11 // pred_check
          %p416 = pneg %p205
        $region38: #{tpu_custom_call.1} parent=11 // pred_check_branch
          %418 = sbr.rel (%p416) target = $region40
        $region39: #{tpu_custom_call.1} parent=11 // pred_region
          _
        $region40: #{tpu_custom_call.1} parent=11 // pred_fallthru
          _
        // Predicated region
        $region41: #{tpu_custom_call.1} parent=11 // pred_check
          %p419 = pneg %p226
        $region42: #{tpu_custom_call.1} parent=11 // pred_check_branch
          %421 = sbr.rel (%p419) target = $region44
        $region43: #{tpu_custom_call.1} parent=11 // pred_region
          _
        $region44: #{tpu_custom_call.1} parent=11 // pred_fallthru
          _
        // Predicated region
        $region45: #{tpu_custom_call.1} parent=11 // pred_check
          %p422 = pneg %p247
        $region46: #{tpu_custom_call.1} parent=11 // pred_check_branch
          %424 = sbr.rel (%p422) target = $region48
        $region47: #{tpu_custom_call.1} parent=11 // pred_region
          _
        $region48: #{tpu_custom_call.1} parent=11 // pred_fallthru
          _
        // Predicated region
        $region49: #{tpu_custom_call.1} parent=11 // pred_check
          %p425 = pneg %p268
        $region50: #{tpu_custom_call.1} parent=11 // pred_check_branch
          %427 = sbr.rel (%p425) target = $region52
        $region51: #{tpu_custom_call.1} parent=11 // pred_region
          _
        $region52: #{tpu_custom_call.1} parent=11 // pred_fallthru
          _
        // Predicated region
        $region53: #{tpu_custom_call.1} parent=11 // pred_check
          %p428 = pneg %p289
        $region54: #{tpu_custom_call.1} parent=11 // pred_check_branch
          %430 = sbr.rel (%p428) target = $region56
        $region55: #{tpu_custom_call.1} parent=11 // pred_region
          _
        $region56: #{tpu_custom_call.1} parent=11 // pred_fallthru
          _
        // Predicated region
        $region57: #{tpu_custom_call.1} parent=11 // pred_check
          %p431 = pneg %p310
        $region58: #{tpu_custom_call.1} parent=11 // pred_check_branch
          %433 = sbr.rel (%p431) target = $region60
        $region59: #{tpu_custom_call.1} parent=11 // pred_region
          _
        $region60: #{tpu_custom_call.1} parent=11 // pred_fallthru
          _
        // Predicated region
        $region61: #{tpu_custom_call.1} parent=11 // pred_check
          %p434 = pneg %p331
        $region62: #{tpu_custom_call.1} parent=11 // pred_check_branch
          %436 = sbr.rel (%p434) target = $region64
        $region63: #{tpu_custom_call.1} parent=11 // pred_region
          _
        $region64: #{tpu_custom_call.1} parent=11 // pred_fallthru
          _
      $region12: #{tpu_custom_call.1} parent=5 // pred_fallthru
        _
      %p437 = scmp.lt.s32.totalorder %s32, 2
      // Predicated region
      $region65: #{tpu_custom_call.1} parent=5 // pred_check
        %p438 = pneg %p437
      $region66: #{tpu_custom_call.1} parent=5 // pred_check_branch
        %440 = sbr.rel (%p438) target = $region68
      $region67: #{tpu_custom_call.1} parent=5 // pred_region
        // Predicated region
        $region69: #{tpu_custom_call.1} parent=67 // pred_check
          %p441 = pneg %p52
        $region70: #{tpu_custom_call.1} parent=67 // pred_check_branch
          %443 = sbr.rel (%p441) target = $region72
        $region71: #{tpu_custom_call.1} parent=67 // pred_region
          %p444 = scmp.lt.s32.totalorder %s32, 1
          %s445 = scalar_select %p444, %s32, 1
          %s446 = smul.addr %s445, 8
          %s447 = scalar_lea.vmem %s0, %s446
        $region72: #{tpu_custom_call.1} parent=67 // pred_fallthru
          _
      $region68: #{tpu_custom_call.1} parent=5 // pred_fallthru
        _
      %p448 = scmp.le.s32.totalorder 1, %s32
      %p449 = scmp.lt.s32.totalorder %s32, 3
      %p450 = pnand %p448, %p449
      %p451 = pneg %p450
      // Predicated region
      $region73: #{tpu_custom_call.1} parent=5 // pred_check
        _
      $region74: #{tpu_custom_call.1} parent=5 // pred_check_branch
        %453 = sbr.rel (%p450) target = $region76
      $region75: #{tpu_custom_call.1} parent=5 // pred_region
        %s454 = ssub.s32 %s32, 1
        %p455 = scmp.lt.s32.totalorder %s37, 1
        %s456 = scalar_select %p455, %s37, 1
        %s457 = smul.addr %s456, 8
        %s458 = scalar_lea.vmem %s0, %s457
        %p459 = pneg %p58
        %p460 = pneg %p55
        %p461 = pneg %p79
        %p462 = pneg %p76
        %p463 = pneg %p100
        %p464 = pneg %p97
        %p465 = pneg %p121
        %p466 = pneg %p118
        %p467 = pneg %p142
        %p468 = pneg %p139
        %p469 = pneg %p163
        %p470 = pneg %p160
        %p471 = pneg %p184
        %p472 = pneg %p181
        %p473 = pneg %p205
        %p474 = pneg %p202
        %p475 = pneg %p226
        %p476 = pneg %p223
        %p477 = pneg %p247
        %p478 = pneg %p244
        %p479 = pneg %p268
        %p480 = pneg %p265
        %p481 = pneg %p289
        %p482 = pneg %p286
        %p483 = pneg %p310
        %p484 = pneg %p307
        %p485 = pneg %p331
        %p486 = pneg %p328
        %p487 = pneg %p357
        %p488 = pneg %p354
        %s489 = sand.u32 %s344, 1
        %s490 = scalar_lea.sflag [#allocation6], %s489
        %s491 = sand.u32 %s344, 1
        %s492 = smul.addr %s491, 2
        %s493 = scalar_lea.vmem [#allocation5], %s492
        %p494 = pneg %p383
        %p495 = pneg %p380
        %s496 = sand.u32 %s370, 1
        %s497 = scalar_lea.sflag [#allocation8], %s496
        %s498 = sand.u32 %s370, 1
        %s499 = scalar_lea.vmem [#allocation7], %s498
        %p500 = scmp.lt.s32.totalorder %s37, 1
        %s501 = scalar_select %p500, %s37, 1
        %s502 = smul.addr %s501, 8
        %s503 = scalar_lea.vmem %s0, %s502
        %v505 = vld [vmem:[%s503] sm:$0xff]
        %v506 = vld [vmem:[%s1] sm:$0xf]
        %v507 = vld [vmem:[%s1 + $0x4] sm:$0xf]
        %v508 = vld [vmem:[%s1 + $0x8] sm:$0xf]
        %v509 = vld [vmem:[%s1 + $0xc] sm:$0xf]
        %v510 = vpack.c.bf16 %v505, %v505
        %v511 = vld [vmem:[%s2] sm:$0xff]
        %v512 = vld [vmem:[%s2 + $0x8] sm:$0xff]
        %v513 = vld [vmem:[%s2 + $0x10] sm:$0xff]
        %v514 = vld [vmem:[%s2 + $0x18] sm:$0xff]
        %516 = vset.pattern.permute.xlu0 0
        %517 = vperm.xlu0 %516, %v511
        %v518 = vpop.permute.xlu0 %517
        %521 = vset.pattern.permute.xlu0 0
        %522 = vperm.xlu0 %521, %v512
        %v523 = vpop.permute.xlu0 %522
        %526 = vset.pattern.permute.xlu0 0
        %527 = vperm.xlu0 %526, %v513
        %v528 = vpop.permute.xlu0 %527
        %531 = vset.pattern.permute.xlu0 0
        %532 = vperm.xlu0 %531, %v514
        %v533 = vpop.permute.xlu0 %532
        %v539 = vunpack.c.l.b16 %v506
        %v540 = vunpack.c.l.b16 %v507
        %v541 = vunpack.c.l.b16 %v508
        %v542 = vunpack.c.l.b16 %v509
        %v543 = vpack.c.b16 %v540, %v539
        %v544 = vpack.c.b16 %v542, %v541
        %vm545 = vcmask 64512
        %v547 = vsel %vm545, %v543, 0
        %v550 = vsel %vm545, %v544, 0
        %vm552 = vcmask 1043456
        %v554 = vsel %vm552, %v510, 0
        %556 = vmatpush.bf16.msra.mxu0 0
        %557 = vmatpush.bf16.msra.mxu0 0
        %558 = vmatpush.bf16.msra.mxu0 0
        %559 = vmatpush.bf16.msra.mxu0 0
        %560 = vmatpush.bf16.msra.mxu0 0
        %561 = vmatpush.bf16.msra.mxu0 0
        %562 = vmatpush.bf16.msra.mxu0 0
        %563 = vmatpush.bf16.msra.mxu0 %v554
        %564 = vmatmul.bf16.gmra.mxu0 %v547
        %v565 = vpop.f32.mrf.mxu0
        %v566 = vadd.f32 %v518, %v565
        %v567 = vpop.f32.mrf.mxu0
        %v568 = vadd.f32 %v523, %v567
        %569 = vmatmul.bf16.gmra.mxu0 %v550
        %v570 = vpop.f32.mrf.mxu0
        %v571 = vadd.f32 %v528, %v570
        %v572 = vpop.f32.mrf.mxu0
        %v573 = vadd.f32 %v533, %v572
        %574 = vdwg.mxu0
        %vm575 = vcmp.gt.f32.partialorder %v566, 0.0
        %vm576 = vcmp.gt.f32.partialorder %v568, 0.0
        %vm577 = vcmp.gt.f32.partialorder %v571, 0.0
        %vm578 = vcmp.gt.f32.partialorder %v573, 0.0
        %v579 = vmin.f32 %v566, 0.0
        %v580 = vmin.f32 %v568, 0.0
        %v581 = vmin.f32 %v571, 0.0
        %v582 = vmin.f32 %v573, 0.0
        %v583 = vmul.f32 %v579, 1.442695
        %v584 = vpow.pop %v583
        %v585 = vmul.f32 %v580, 1.442695
        %v586 = vpow.pop %v585
        %v587 = vmul.f32 %v581, 1.442695
        %v588 = vpow.pop %v587
        %v589 = vmul.f32 %v582, 1.442695
        %v590 = vpow.pop %v589
        %v591 = vsub.f32 %v584, 1.0
        %v592 = vsub.f32 %v586, 1.0
        %v593 = vsub.f32 %v588, 1.0
        %v594 = vsub.f32 %v590, 1.0
        %v595 = vsel %vm575, %v566, %v591
        %v596 = vsel %vm576, %v568, %v592
        %v597 = vsel %vm577, %v571, %v593
        %v598 = vsel %vm578, %v573, %v594
        %v599 = vld [vmem:[%s3] sm:$0xf]
        %v600 = vld [vmem:[%s3 + $0x4] sm:$0xf]
        %v601 = vld [vmem:[%s3 + $0x8] sm:$0xf]
        %v602 = vld [vmem:[%s3 + $0xc] sm:$0xf]
        %v603 = vpack.c.bf16 %v596, %v595
        %v604 = vpack.c.bf16 %v598, %v597
        %v605 = vld [vmem:[%s4] sm:$0xff]
        %v606 = vld [vmem:[%s4 + $0x8] sm:$0xff]
        %v607 = vld [vmem:[%s4 + $0x10] sm:$0xff]
        %v608 = vld [vmem:[%s4 + $0x18] sm:$0xff]
        %610 = vset.pattern.permute.xlu0 0
        %611 = vperm.xlu0 %610, %v605
        %v612 = vpop.permute.xlu0 %611
        %615 = vset.pattern.permute.xlu0 0
        %616 = vperm.xlu0 %615, %v606
        %v617 = vpop.permute.xlu0 %616
        %620 = vset.pattern.permute.xlu0 0
        %621 = vperm.xlu0 %620, %v607
        %v622 = vpop.permute.xlu0 %621
        %625 = vset.pattern.permute.xlu0 0
        %626 = vperm.xlu0 %625, %v608
        %v627 = vpop.permute.xlu0 %626
        %v633 = vunpack.c.l.b16 %v599
        %v634 = vunpack.c.l.b16 %v600
        %v635 = vunpack.c.l.b16 %v601
        %v636 = vunpack.c.l.b16 %v602
        %v637 = vpack.c.b16 %v634, %v633
        %v638 = vpack.c.b16 %v636, %v635
        %vm639 = vcmask 261120
        %v641 = vsel %vm639, %v637, 0
        %v644 = vsel %vm639, %v638, 0
        %646 = vmatpush.bf16.msra.mxu0 0
        %647 = vmatpush.bf16.msra.mxu0 0
        %648 = vmatpush.bf16.msra.mxu0 0
        %649 = vmatpush.bf16.msra.mxu0 0
        %650 = vmatpush.bf16.msra.mxu0 0
        %651 = vmatpush.bf16.msra.mxu0 0
        %652 = vmatpush.bf16.msra.mxu0 %v604
        %653 = vmatpush.bf16.msra.mxu0 %v603
        %654 = vmatmul.bf16.gmra.mxu0 %v641
        %v655 = vpop.f32.mrf.mxu0
        %v656 = vadd.f32 %v612, %v655
        %v657 = vpop.f32.mrf.mxu0
        %v658 = vadd.f32 %v617, %v657
        %659 = vmatmul.bf16.gmra.mxu0 %v644
        %v660 = vpop.f32.mrf.mxu0
        %v661 = vadd.f32 %v622, %v660
        %v662 = vpop.f32.mrf.mxu0
        %v663 = vadd.f32 %v627, %v662
        %664 = vdwg.mxu0
        %vm665 = vcmp.gt.f32.partialorder %v656, 0.0
        %vm666 = vcmp.gt.f32.partialorder %v658, 0.0
        %vm667 = vcmp.gt.f32.partialorder %v661, 0.0
        %vm668 = vcmp.gt.f32.partialorder %v663, 0.0
        %v669 = vmin.f32 %v656, 0.0
        %v670 = vmin.f32 %v658, 0.0
        %v671 = vmin.f32 %v661, 0.0
        %v672 = vmin.f32 %v663, 0.0
        %v673 = vmul.f32 %v669, 1.442695
        %v674 = vpow.pop %v673
        %v675 = vmul.f32 %v670, 1.442695
        %v676 = vpow.pop %v675
        %v677 = vmul.f32 %v671, 1.442695
        %v678 = vpow.pop %v677
        %v679 = vmul.f32 %v672, 1.442695
        %v680 = vpow.pop %v679
        %v681 = vsub.f32 %v674, 1.0
        %v682 = vsub.f32 %v676, 1.0
        %v683 = vsub.f32 %v678, 1.0
        %v684 = vsub.f32 %v680, 1.0
        %v685 = vsel %vm665, %v656, %v681
        %v686 = vsel %vm666, %v658, %v682
        %v687 = vsel %vm667, %v661, %v683
        %v688 = vsel %vm668, %v663, %v684
        %v689 = vld [vmem:[%s5] sm:$0xf]
        %v690 = vld [vmem:[%s5 + $0x4] sm:$0xf]
        %v691 = vld [vmem:[%s5 + $0x8] sm:$0xf]
        %v692 = vld [vmem:[%s5 + $0xc] sm:$0xf]
        %v693 = vpack.c.bf16 %v686, %v685
        %v694 = vpack.c.bf16 %v688, %v687
        %v695 = vld [vmem:[%s6] sm:$0xff]
        %v696 = vld [vmem:[%s6 + $0x8] sm:$0xff]
        %v697 = vld [vmem:[%s6 + $0x10] sm:$0xff]
        %v698 = vld [vmem:[%s6 + $0x18] sm:$0xff]
        %700 = vset.pattern.permute.xlu0 0
        %701 = vperm.xlu0 %700, %v695
        %v702 = vpop.permute.xlu0 %701
        %705 = vset.pattern.permute.xlu0 0
        %706 = vperm.xlu0 %705, %v696
        %v707 = vpop.permute.xlu0 %706
        %710 = vset.pattern.permute.xlu0 0
        %711 = vperm.xlu0 %710, %v697
        %v712 = vpop.permute.xlu0 %711
        %715 = vset.pattern.permute.xlu0 0
        %716 = vperm.xlu0 %715, %v698
        %v717 = vpop.permute.xlu0 %716
        %v723 = vunpack.c.l.b16 %v689
        %v724 = vunpack.c.l.b16 %v690
        %v725 = vunpack.c.l.b16 %v691
        %v726 = vunpack.c.l.b16 %v692
        %v727 = vpack.c.b16 %v724, %v723
        %v728 = vpack.c.b16 %v726, %v725
        %v730 = vsel %vm639, %v727, 0
        %v733 = vsel %vm639, %v728, 0
        %735 = vmatpush.bf16.msra.mxu0 0
        %736 = vmatpush.bf16.msra.mxu0 0
        %737 = vmatpush.bf16.msra.mxu0 0
        %738 = vmatpush.bf16.msra.mxu0 0
        %739 = vmatpush.bf16.msra.mxu0 0
        %740 = vmatpush.bf16.msra.mxu0 0
        %741 = vmatpush.bf16.msra.mxu0 %v694
        %742 = vmatpush.bf16.msra.mxu0 %v693
        %743 = vmatmul.bf16.gmra.mxu0 %v730
        %v744 = vpop.f32.mrf.mxu0
        %v745 = vadd.f32 %v702, %v744
        %v746 = vpop.f32.mrf.mxu0
        %v747 = vadd.f32 %v707, %v746
        %748 = vmatmul.bf16.gmra.mxu0 %v733
        %v749 = vpop.f32.mrf.mxu0
        %v750 = vadd.f32 %v712, %v749
        %v751 = vpop.f32.mrf.mxu0
        %v752 = vadd.f32 %v717, %v751
        %753 = vdwg.mxu0
        %vm754 = vcmp.gt.f32.partialorder %v745, 0.0
        %vm755 = vcmp.gt.f32.partialorder %v747, 0.0
        %vm756 = vcmp.gt.f32.partialorder %v750, 0.0
        %vm757 = vcmp.gt.f32.partialorder %v752, 0.0
        %v758 = vmin.f32 %v745, 0.0
        %v759 = vmin.f32 %v747, 0.0
        %v760 = vmin.f32 %v750, 0.0
        %v761 = vmin.f32 %v752, 0.0
        %v762 = vmul.f32 %v758, 1.442695
        %v763 = vpow.pop %v762
        %v764 = vmul.f32 %v759, 1.442695
        %v765 = vpow.pop %v764
        %v766 = vmul.f32 %v760, 1.442695
        %v767 = vpow.pop %v766
        %v768 = vmul.f32 %v761, 1.442695
        %v769 = vpow.pop %v768
        %v770 = vsub.f32 %v763, 1.0
        %v771 = vsub.f32 %v765, 1.0
        %v772 = vsub.f32 %v767, 1.0
        %v773 = vsub.f32 %v769, 1.0
        %v774 = vsel %vm754, %v745, %v770
        %v775 = vsel %vm755, %v747, %v771
        %v776 = vsel %vm756, %v750, %v772
        %v777 = vsel %vm757, %v752, %v773
        %v778 = vld [vmem:[%s7] sm:$0xf]
        %v779 = vld [vmem:[%s7 + $0x4] sm:$0x1]
        %v780 = vpack.c.bf16 %v775, %v774
        %v781 = vpack.c.bf16 %v777, %v776
        %v784 = vunpack.c.l.b16 %v778
        %v785 = vunpack.c.l.b16 %v779
        %v786 = vpack.c.b16 %v785, %v784
        %v788 = vsel %vm639, %v786, 0
        %790 = vmatpush.bf16.msra.mxu0 0
        %791 = vmatpush.bf16.msra.mxu0 0
        %792 = vmatpush.bf16.msra.mxu0 0
        %793 = vmatpush.bf16.msra.mxu0 0
        %794 = vmatpush.bf16.msra.mxu0 0
        %795 = vmatpush.bf16.msra.mxu0 0
        %796 = vmatpush.bf16.msra.mxu0 %v781
        %797 = vmatpush.bf16.msra.mxu0 %v780
        %798 = vmatmul.bf16.gmra.mxu0 %v788
        %v799 = vpop.f32.mrf.mxu0
        %v800 = vadd.f32 0.0, %v799
        %v801 = vpop.f32.mrf.mxu0
        %v802 = vadd.f32 0.0, %v801
        %803 = vdwg.mxu0
        %v804 = vld [vmem:[#allocation3] sm:$0x1]
        %806 = vset.pattern.permute.xlu0 0
        %807 = vperm.xlu0 %806, %v804
        %v808 = vpop.permute.xlu0 %807
        %v810 = vperm.slane %v808, 0
        %v811 = vadd.f32 %v800, %v810
        %v813 = vrot.slane %v800, 1
        %814 = vrot.lane.b32.xlu0 %v813, 127
        %v815 = vpop.permute.xlu0 %814
        %v817 = vadd.f32 %v811, %v815
        %v818 = vrot.slane %v800, 2
        %819 = vrot.lane.b32.xlu0 %v818, 126
        %v820 = vpop.permute.xlu0 %819
        %v822 = vadd.f32 %v817, %v820
        %v823 = vrot.slane %v800, 3
        %824 = vrot.lane.b32.xlu0 %v823, 125
        %v825 = vpop.permute.xlu0 %824
        %v827 = vadd.f32 %v822, %v825
        %v828 = vrot.slane %v800, 4
        %829 = vrot.lane.b32.xlu0 %v828, 124
        %v830 = vpop.permute.xlu0 %829
        %v832 = vadd.f32 %v827, %v830
        %v833 = vrot.slane %v800, 5
        %834 = vrot.lane.b32.xlu0 %v833, 123
        %v835 = vpop.permute.xlu0 %834
        %v837 = vadd.f32 %v832, %v835
        %v838 = vrot.slane %v800, 6
        %839 = vrot.lane.b32.xlu0 %v838, 122
        %v840 = vpop.permute.xlu0 %839
        %v842 = vadd.f32 %v837, %v840
        %v843 = vrot.slane %v800, 7
        %844 = vrot.lane.b32.xlu0 %v843, 121
        %v845 = vpop.permute.xlu0 %844
        %v847 = vadd.f32 %v842, %v845
        %849 = vrot.lane.b32.xlu0 %v802, 120
        %v850 = vpop.permute.xlu0 %849
        %v852 = vadd.f32 %v847, %v850
        %vm853 = vcmask 188416
        %854 = vst.msk [vmem:[%s493] sm:$0x1] %vm853, %v852
        %856 = vrot.lane.b32.xlu0 %v852, 96
        %v857 = vpop.permute.xlu0 %856
        %859 = vst.msk [vmem:[%s493 + $0x1] sm:$0x1] %vm853, %v857
        %v860 = vld [vmem:[%s493] sm:$0x3]
        %vm861 = vcmask 189440
        %v862 = vsel %vm861, %v860, -inf
        %863 = vmax.xlane.f32.xlu0 %v862
        %v864 = vpop.xlane.xlu0 %863
        %v865 = vsub.f32 %v860, %v864
        %v866 = vmul.f32 %v865, 1.442695
        %v867 = vpow.pop %v866
        %v868 = vsel %vm861, %v867, 0.0
        %869 = vadd.xlane.f32.xlu0 %v868
        %v870 = vpop.xlane.xlu0 %869
        %v871 = vrcp.pop %v870
        %v872 = vmul.f32 %v867, %v871
        %873 = vst.msk [vmem:[%s493] sm:$0x3] %vm861, %v872
        %v874 = vsel %vm639, %v505, 0.0
        %875 = vadd.xlane.f32.xlu0 %v874
        %v876 = vpop.xlane.xlu0 %875
        %v877 = vrcp.pop 32.0
        %v878 = vmul.f32 32.0, %v877
        %v879 = vsub.f32 1.0, %v878
        %v880 = vmul.f32 %v877, %v879
        %v881 = vadd.f32 %v877, %v880
        %vm882 = vweird.f32 %v877
        %v883 = vsel %vm882, %v877, %v881
        %v884 = vmul.f32 %v876, %v883
        %vm885 = vcmask 7168
        %886 = vst.msk [vmem:[#allocation2] sm:$0xff] %vm885, %v884
        %888 = vrot.lane.b32.xlu0 %v505, 96
        %v889 = vpop.permute.xlu0 %888
        %v891 = vsel %vm639, %v889, 0.0
        %892 = vadd.xlane.f32.xlu0 %v891
        %v893 = vpop.xlane.xlu0 %892
        %v894 = vmul.f32 %v893, %v883
        %vm895 = vcmask 15368
        %896 = vst.msk [vmem:[#allocation2] sm:$0xff] %vm895, %v894
        %v897 = vld [vmem:[#allocation2] sm:$0xff]
        %v898 = vld [vmem:[%s9] sm:$0xf]
        %v899 = vld [vmem:[%s9 + $0x4] sm:$0xf]
        %v900 = vld [vmem:[%s9 + $0x8] sm:$0xf]
        %v901 = vld [vmem:[%s9 + $0xc] sm:$0xf]
        %v902 = vpack.c.bf16 %v897, %v897
        %v907 = vunpack.c.l.b16 %v898
        %v908 = vunpack.c.l.b16 %v899
        %v909 = vunpack.c.l.b16 %v900
        %v910 = vunpack.c.l.b16 %v901
        %v911 = vpack.c.b16 %v908, %v907
        %v912 = vpack.c.b16 %v910, %v909
        %v914 = vsel %vm545, %v911, 0
        %v917 = vsel %vm545, %v912, 0
        %v920 = vsel %vm552, %v902, 0
        %922 = vmatpush.bf16.msra.mxu0 0
        %923 = vmatpush.bf16.msra.mxu0 0
        %924 = vmatpush.bf16.msra.mxu0 0
        %925 = vmatpush.bf16.msra.mxu0 0
        %926 = vmatpush.bf16.msra.mxu0 0
        %927 = vmatpush.bf16.msra.mxu0 0
        %928 = vmatpush.bf16.msra.mxu0 0
        %929 = vmatpush.bf16.msra.mxu0 %v920
        %930 = vmatmul.bf16.gmra.mxu0 %v914
        %v931 = vpop.f32.mrf.mxu0
        %v932 = vadd.f32 0.0, %v931
        %v933 = vpop.f32.mrf.mxu0
        %v934 = vadd.f32 0.0, %v933
        %935 = vmatmul.bf16.gmra.mxu0 %v917
        %v936 = vpop.f32.mrf.mxu0
        %v937 = vadd.f32 0.0, %v936
        %v938 = vpop.f32.mrf.mxu0
        %v939 = vadd.f32 0.0, %v938
        %940 = vdwg.mxu0
        %vm941 = vcmp.gt.f32.partialorder %v932, 0.0
        %vm942 = vcmp.gt.f32.partialorder %v934, 0.0
        %vm943 = vcmp.gt.f32.partialorder %v937, 0.0
        %vm944 = vcmp.gt.f32.partialorder %v939, 0.0
        %v945 = vmin.f32 %v932, 0.0
        %v946 = vmin.f32 %v934, 0.0
        %v947 = vmin.f32 %v937, 0.0
        %v948 = vmin.f32 %v939, 0.0
        %v949 = vmul.f32 %v945, 1.442695
        %v950 = vpow.pop %v949
        %v951 = vmul.f32 %v946, 1.442695
        %v952 = vpow.pop %v951
        %v953 = vmul.f32 %v947, 1.442695
        %v954 = vpow.pop %v953
        %v955 = vmul.f32 %v948, 1.442695
        %v956 = vpow.pop %v955
        %v957 = vsub.f32 %v950, 1.0
        %v958 = vsub.f32 %v952, 1.0
        %v959 = vsub.f32 %v954, 1.0
        %v960 = vsub.f32 %v956, 1.0
        %v961 = vsel %vm941, %v932, %v957
        %v962 = vsel %vm942, %v934, %v958
        %v963 = vsel %vm943, %v937, %v959
        %v964 = vsel %vm944, %v939, %v960
        %v965 = vld [vmem:[%s10] sm:$0xf]
        %v966 = vld [vmem:[%s10 + $0x4] sm:$0xf]
        %v967 = vld [vmem:[%s10 + $0x8] sm:$0xf]
        %v968 = vld [vmem:[%s10 + $0xc] sm:$0xf]
        %v969 = vpack.c.bf16 %v962, %v961
        %v970 = vpack.c.bf16 %v964, %v963
        %v975 = vunpack.c.l.b16 %v965
        %v976 = vunpack.c.l.b16 %v966
        %v977 = vunpack.c.l.b16 %v967
        %v978 = vunpack.c.l.b16 %v968
        %v979 = vpack.c.b16 %v976, %v975
        %v980 = vpack.c.b16 %v978, %v977
        %v982 = vsel %vm639, %v979, 0
        %v985 = vsel %vm639, %v980, 0
        %987 = vmatpush.bf16.msra.mxu0 0
        %988 = vmatpush.bf16.msra.mxu0 0
        %989 = vmatpush.bf16.msra.mxu0 0
        %990 = vmatpush.bf16.msra.mxu0 0
        %991 = vmatpush.bf16.msra.mxu0 0
        %992 = vmatpush.bf16.msra.mxu0 0
        %993 = vmatpush.bf16.msra.mxu0 %v970
        %994 = vmatpush.bf16.msra.mxu0 %v969
        %995 = vmatmul.bf16.gmra.mxu0 %v982
        %v996 = vpop.f32.mrf.mxu0
        %v997 = vadd.f32 0.0, %v996
        %v998 = vpop.f32.mrf.mxu0
        %v999 = vadd.f32 0.0, %v998
        %1000 = vmatmul.bf16.gmra.mxu0 %v985
        %v1001 = vpop.f32.mrf.mxu0
        %v1002 = vadd.f32 0.0, %v1001
        %v1003 = vpop.f32.mrf.mxu0
        %v1004 = vadd.f32 0.0, %v1003
        %1005 = vdwg.mxu0
        %vm1006 = vcmp.gt.f32.partialorder %v997, 0.0
        %vm1007 = vcmp.gt.f32.partialorder %v999, 0.0
        %vm1008 = vcmp.gt.f32.partialorder %v1002, 0.0
        %vm1009 = vcmp.gt.f32.partialorder %v1004, 0.0
        %v1010 = vmin.f32 %v997, 0.0
        %v1011 = vmin.f32 %v999, 0.0
        %v1012 = vmin.f32 %v1002, 0.0
        %v1013 = vmin.f32 %v1004, 0.0
        %v1014 = vmul.f32 %v1010, 1.442695
        %v1015 = vpow.pop %v1014
        %v1016 = vmul.f32 %v1011, 1.442695
        %v1017 = vpow.pop %v1016
        %v1018 = vmul.f32 %v1012, 1.442695
        %v1019 = vpow.pop %v1018
        %v1020 = vmul.f32 %v1013, 1.442695
        %v1021 = vpow.pop %v1020
        %v1022 = vsub.f32 %v1015, 1.0
        %v1023 = vsub.f32 %v1017, 1.0
        %v1024 = vsub.f32 %v1019, 1.0
        %v1025 = vsub.f32 %v1021, 1.0
        %v1026 = vsel %vm1006, %v997, %v1022
        %v1027 = vsel %vm1007, %v999, %v1023
        %v1028 = vsel %vm1008, %v1002, %v1024
        %v1029 = vsel %vm1009, %v1004, %v1025
        %v1030 = vld [vmem:[%s11] sm:$0xf]
        %v1031 = vld [vmem:[%s11 + $0x4] sm:$0xf]
        %v1032 = vld [vmem:[%s11 + $0x8] sm:$0xf]
        %v1033 = vld [vmem:[%s11 + $0xc] sm:$0xf]
        %v1034 = vpack.c.bf16 %v1027, %v1026
        %v1035 = vpack.c.bf16 %v1029, %v1028
        %v1040 = vunpack.c.l.b16 %v1030
        %v1041 = vunpack.c.l.b16 %v1031
        %v1042 = vunpack.c.l.b16 %v1032
        %v1043 = vunpack.c.l.b16 %v1033
        %v1044 = vpack.c.b16 %v1041, %v1040
        %v1045 = vpack.c.b16 %v1043, %v1042
        %v1047 = vsel %vm639, %v1044, 0
        %v1050 = vsel %vm639, %v1045, 0
        %1052 = vmatpush.bf16.msra.mxu0 0
        %1053 = vmatpush.bf16.msra.mxu0 0
        %1054 = vmatpush.bf16.msra.mxu0 0
        %1055 = vmatpush.bf16.msra.mxu0 0
        %1056 = vmatpush.bf16.msra.mxu0 0
        %1057 = vmatpush.bf16.msra.mxu0 0
        %1058 = vmatpush.bf16.msra.mxu0 %v1035
        %1059 = vmatpush.bf16.msra.mxu0 %v1034
        %1060 = vmatmul.bf16.gmra.mxu0 %v1047
        %v1061 = vpop.f32.mrf.mxu0
        %v1062 = vadd.f32 0.0, %v1061
        %v1063 = vpop.f32.mrf.mxu0
        %v1064 = vadd.f32 0.0, %v1063
        %1065 = vmatmul.bf16.gmra.mxu0 %v1050
        %v1066 = vpop.f32.mrf.mxu0
        %v1067 = vadd.f32 0.0, %v1066
        %v1068 = vpop.f32.mrf.mxu0
        %v1069 = vadd.f32 0.0, %v1068
        %1070 = vdwg.mxu0
        %vm1071 = vcmp.gt.f32.partialorder %v1062, 0.0
        %vm1072 = vcmp.gt.f32.partialorder %v1064, 0.0
        %vm1073 = vcmp.gt.f32.partialorder %v1067, 0.0
        %vm1074 = vcmp.gt.f32.partialorder %v1069, 0.0
        %v1075 = vmin.f32 %v1062, 0.0
        %v1076 = vmin.f32 %v1064, 0.0
        %v1077 = vmin.f32 %v1067, 0.0
        %v1078 = vmin.f32 %v1069, 0.0
        %v1079 = vmul.f32 %v1075, 1.442695
        %v1080 = vpow.pop %v1079
        %v1081 = vmul.f32 %v1076, 1.442695
        %v1082 = vpow.pop %v1081
        %v1083 = vmul.f32 %v1077, 1.442695
        %v1084 = vpow.pop %v1083
        %v1085 = vmul.f32 %v1078, 1.442695
        %v1086 = vpow.pop %v1085
        %v1087 = vsub.f32 %v1080, 1.0
        %v1088 = vsub.f32 %v1082, 1.0
        %v1089 = vsub.f32 %v1084, 1.0
        %v1090 = vsub.f32 %v1086, 1.0
        %v1091 = vsel %vm1071, %v1062, %v1087
        %v1092 = vsel %vm1072, %v1064, %v1088
        %v1093 = vsel %vm1073, %v1067, %v1089
        %v1094 = vsel %vm1074, %v1069, %v1090
        %v1095 = vld [vmem:[%s12] sm:$0x1]
        %v1096 = vpack.c.bf16 %v1092, %v1091
        %v1097 = vpack.c.bf16 %v1094, %v1093
        %v1098 = vld [vmem:[#allocation4] sm:$0x1]
        %1100 = vset.pattern.permute.xlu0 0
        %1101 = vperm.xlu0 %1100, %v1098
        %v1102 = vpop.permute.xlu0 %1101
        %v1104 = vperm.slane %v1102, 0
        %v1106 = vsel %vm639, %v1095, 0
        %1108 = vmatpush.bf16.msra.mxu0 0
        %1109 = vmatpush.bf16.msra.mxu0 0
        %1110 = vmatpush.bf16.msra.mxu0 0
        %1111 = vmatpush.bf16.msra.mxu0 0
        %1112 = vmatpush.bf16.msra.mxu0 0
        %1113 = vmatpush.bf16.msra.mxu0 0
        %1114 = vmatpush.bf16.msra.mxu0 %v1097
        %1115 = vmatpush.bf16.msra.mxu0 %v1096
        %1116 = vmatmul.bf16.gmra.mxu0 %v1106
        %v1117 = vpop.f32.mrf.mxu0
        %v1118 = vadd.f32 %v1104, %v1117
        %v1119 = vpop.f32.mrf.mxu0
        %1120 = vdwg.mxu0
        %vm1121 = vcmp.gt.f32.partialorder %v1118, 20.0
        %v1122 = vmin.f32 %v1118, 20.0
        %v1123 = vmul.f32 %v1122, 1.442695
        %v1124 = vpow.pop %v1123
        %v1125 = vadd.f32 %v1124, 1.0
        %v1126 = vlog2.pop %v1125
        %v1127 = vmul.f32 %v1126, 0.6931472
        %v1128 = vsel %vm1121, %v1118, %v1127
        %vm1129 = vcmask 8192
        %1130 = vst.msk [vmem:[%s499] sm:$0x1] %vm1129, %v1128
        %s1131 = sand.u32 %s344, 1
        %s1132 = scalar_lea.sflag [#allocation6], %s1131
        %s1133 = sand.u32 %s344, 1
        %s1134 = smul.addr %s1133, 2
        %s1135 = scalar_lea.vmem [#allocation5], %s1134
        %s1136 = sand.u32 %s370, 1
        %s1137 = scalar_lea.sflag [#allocation8], %s1136
        %s1138 = sand.u32 %s370, 1
        %s1139 = scalar_lea.vmem [#allocation7], %s1138
        // Predicated region
        $region77: #{tpu_custom_call.1} parent=75 // pred_check
          %p1140 = pneg %p354
        $region78: #{tpu_custom_call.1} parent=75 // pred_check_branch
          %1142 = sbr.rel (%p1140) target = $region80
        $region79: #{tpu_custom_call.1} parent=75 // pred_region
          %1144 = vsyncadd %s1132, 0
          %s1145 = smul.addr %s37, 2
          %s1146 = scalar_lea.hbm %s14, %s1145
          %s1148 = sshll.u32 %s1135, 4
          %s1149 = int_to_ptr.vmem [resolvable:$true] %s1148
          %s1150 = sshll.u32 %s1146, 4
          %s1151 = int_to_ptr.hbm [resolvable:$true] %s1150
          %1153 = dma.vmem_to_hbm [thread:$0]  %s1149, 32, %s1151, %s1132
        $region80: #{tpu_custom_call.1} parent=75 // pred_fallthru
          _
        // Predicated region
        $region81: #{tpu_custom_call.1} parent=75 // pred_check
          %p1154 = pneg %p380
        $region82: #{tpu_custom_call.1} parent=75 // pred_check_branch
          %1156 = sbr.rel (%p1154) target = $region84
        $region83: #{tpu_custom_call.1} parent=75 // pred_region
          %1158 = vsyncadd %s1137, 0
          %s1159 = scalar_lea.hbm %s15, %s37
          %s1161 = sshll.u32 %s1139, 4
          %s1162 = int_to_ptr.vmem [resolvable:$true] %s1161
          %s1163 = sshll.u32 %s1159, 4
          %s1164 = int_to_ptr.hbm [resolvable:$true] %s1163
          %1166 = dma.vmem_to_hbm [thread:$0]  %s1162, 16, %s1164, %s1137
        $region84: #{tpu_custom_call.1} parent=75 // pred_fallthru
          _
      $region76: #{tpu_custom_call.1} parent=5 // pred_fallthru
        _
      %p1167 = scmp.le.s32.totalorder 2, %s32
      // Predicated region
      $region85: #{tpu_custom_call.1} parent=5 // pred_check
        %p1168 = pneg %p1167
      $region86: #{tpu_custom_call.1} parent=5 // pred_check_branch
        %1170 = sbr.rel (%p1168) target = $region88
      $region87: #{tpu_custom_call.1} parent=5 // pred_region
        %s1171 = ssub.s32 %s32, 2
        // Predicated region
        $region89: #{tpu_custom_call.1} parent=87 // pred_check
          %p1172 = pneg %p360
        $region90: #{tpu_custom_call.1} parent=87 // pred_check_branch
          %1174 = sbr.rel (%p1172) target = $region92
        $region91: #{tpu_custom_call.1} parent=87 // pred_region
          %s1175 = sand.u32 %s345, 1
          %s1176 = scalar_lea.sflag [#allocation6], %s1175
          %s1177 = sand.u32 %s345, 1
          %s1178 = smul.addr %s1177, 2
          %s1179 = scalar_lea.vmem [#allocation5], %s1178
          %1181 = dma.done %s1176, 32
        $region92: #{tpu_custom_call.1} parent=87 // pred_fallthru
          _
        // Predicated region
        $region93: #{tpu_custom_call.1} parent=87 // pred_check
          %p1182 = pneg %p386
        $region94: #{tpu_custom_call.1} parent=87 // pred_check_branch
          %1184 = sbr.rel (%p1182) target = $region96
        $region95: #{tpu_custom_call.1} parent=87 // pred_region
          %s1185 = sand.u32 %s371, 1
          %s1186 = scalar_lea.sflag [#allocation8], %s1185
          %s1187 = sand.u32 %s371, 1
          %s1188 = scalar_lea.vmem [#allocation7], %s1187
          %1190 = dma.done %s1186, 16
        $region96: #{tpu_custom_call.1} parent=87 // pred_fallthru
          _
      $region88: #{tpu_custom_call.1} parent=5 // pred_fallthru
        _
    $region6: #{tpu_custom_call.1} parent=1 // loop_footer
      %s36 = sadd.s32 1, %s32
    $region7: #{tpu_custom_call.1} parent=1 // loop_footer_branch
      %31 = sbr.rel target = $region3
    $region8: #{tpu_custom_call.1} parent=1 // loop_exit
      _
    %1191 = vsyncpa [#allocation6], 1
    %s1192 = scalar_lea.sflag [#allocation6], 1
    %1193 = vsyncpa %s1192, 1
    %1194 = vsyncpa [#allocation8], 1
    %s1195 = scalar_lea.sflag [#allocation8], 1
    %1196 = vsyncpa %s1195, 1

</llo_original>
